<compile_context>
chip_gen: v7x
topology: tpu7x:2x2x1
jax: 0.10.0
libtpu: 0.0.40
codegen_flags: <defaults>
</compile_context>

<pallas_src>
import jax
import jax.numpy as jnp
from jax import lax
from jax.experimental import pallas as pl
from jax.experimental.pallas import tpu as pltpu

# ---- scaled-down hyperparameters ----
B = 2              # batch
CIN = 3            # image channels
H = W = 16         # image spatial
NUM_CLASSES = 8    # stands for 80
WORD_DIM = 32      # stands for 300 (glove dim)
HID = 64           # stands for 1024 (gc1 out)
FEAT_DIM = 128     # stands for 2048 (backbone channels / gc2 out)
C_PAD = 128        # class dim padded to a lane-dense multiple of 128
CS = 128           # HW chunk size for the stem matmul + rolling max pool


# ---------------------------------------------------------------------------
# Fused kernel: chunked 1x1-conv stem + rolling global max pool + gc1 ->
# LeakyReLU -> gc2 + final classification matmul.  No grid: one step,
# everything stays in VMEM.
# ---------------------------------------------------------------------------
def _make_fused_kernel(b, hw):
    bf16 = jnp.bfloat16
    n_chunks = hw // CS
    assert n_chunks * CS == hw

    def kernel(x_ref, ws_ref, word_ref, adj_ref, w1_ref, w2_ref, o_ref):
        # x_ref:    (B, CIN, HW)   f32   lane axis = HW (no wrapper transpose)
        # ws_ref:   (CIN, FEAT)    bf16
        # word_ref: (C_PAD, WORD)  bf16  zero-padded rows >= NUM_CLASSES
        # adj_ref:  (C_PAD, C_PAD) bf16  zero-padded rows/cols >= NUM_CLASSES
        # w1_ref:   (WORD, HID)    bf16
        # w2_ref:   (HID, FEAT)    bf16
        # o_ref:    (B, C_PAD)     f32   lane-dense output slab

        ws = ws_ref[...]                                        # (CIN, FEAT)

        # ---- backbone stand-in: 1x1 conv + AdaptiveMaxPool2d((1,1)) ----
        # TODO(synk): the pretrained timm ResNeXt50 backbone cannot be
        # reproduced here; a deterministic 1x1 conv (channel matmul) stands in.
        # Chunked over HW with a rolling max so the (CS, FEAT) f32 MXU output
        # stays at ~16 vregs instead of materializing (B*HW, FEAT).
        # TODO(synk): the depth-3 contraction fills only ~1-2% of the MXU on
        # v6e/v7x; if a real 1x1 stem survives at full scale, replace the dot
        # with CIN unrolled VPU broadcast-multiply-accumulate outer products.
        feat_rows = []
        for bi in range(b):
            def body(j, acc, bi=bi):
                start = pl.multiple_of(j * CS, CS)
                xc = x_ref[bi, :, pl.ds(start, CS)].astype(bf16)   # (CIN, CS)
                fm = lax.dot_general(
                    xc, ws, (((0,), (0,)), ((), ())),
                    preferred_element_type=jnp.float32)            # (CS, FEAT)
                return jnp.maximum(acc, fm.max(axis=0, keepdims=True))

            acc0 = jnp.full((1, FEAT_DIM), -jnp.inf, jnp.float32)
            feat_rows.append(
                lax.fori_loop(0, n_chunks, body, acc0, unroll=True))
        feat = jnp.concatenate(feat_rows, axis=0)                  # (B, FEAT)

        # ---- gc1: adj @ (word @ W1), then LeakyReLU(0.2) ----
        # Association kept (HID < C_PAD here -> already FLOP-optimal); at full
        # scale (HID/FEAT > C_PAD) use (adj @ word) @ W1 / (adj @ x1) @ W2.
        s1 = jnp.dot(word_ref[...], w1_ref[...],
                     preferred_element_type=jnp.float32)           # (C_PAD, HID)
        x1 = jnp.dot(adj_ref[...], s1.astype(bf16),
                     preferred_element_type=jnp.float32)           # (C_PAD, HID)
        x1 = jnp.where(x1 >= 0.0, x1, 0.2 * x1)                    # f32 LeakyReLU

        # ---- gc2: adj @ (x1 @ W2) ----
        s2 = jnp.dot(x1.astype(bf16), w2_ref[...],
                     preferred_element_type=jnp.float32)           # (C_PAD, FEAT)
        x2 = jnp.dot(adj_ref[...], s2.astype(bf16),
                     preferred_element_type=jnp.float32)           # (C_PAD, FEAT)

        # ---- scores = feature @ x2.T (contract FEAT, no explicit transpose)
        o_ref[...] = lax.dot_general(
            feat.astype(bf16), x2.astype(bf16),
            (((1,), (1,)), ((), ())),
            preferred_element_type=jnp.float32)                    # (B, C_PAD)

    return kernel


# ---------------------------------------------------------------------------
# One-time constant prep (model init): bf16 casts + class-dim zero-padding.
# Mathematically exact for the first NUM_CLASSES outputs.
# ---------------------------------------------------------------------------
def prepare_params(w_stem, word, adj, w1, w2):
    bf16 = jnp.bfloat16
    nc = word.shape[0]
    word_p = jnp.zeros((C_PAD, word.shape[1]), bf16).at[:nc].set(
        word.astype(bf16))
    adj_p = jnp.zeros((C_PAD, C_PAD), bf16).at[:nc, :nc].set(adj.astype(bf16))
    return (w_stem.astype(bf16), word_p, adj_p, w1.astype(bf16),
            w2.astype(bf16))


@jax.jit
def mlgcn_forward(x_nchw, w_stem_b, word_p, adj_p, w1_b, w2_b):
    b, c, h, w = x_nchw.shape
    hw = h * w
    # Contiguous collapse only -- no HBM transpose of the activation per call.
    x3 = x_nchw.reshape(b, c, hw)

    flops = 2 * (b * hw * c * FEAT_DIM
                 + C_PAD * WORD_DIM * HID
                 + C_PAD * C_PAD * HID
                 + C_PAD * HID * FEAT_DIM
                 + C_PAD * C_PAD * FEAT_DIM
                 + b * C_PAD * FEAT_DIM)
    bytes_accessed = (x3.size * 4 + w_stem_b.size * 2 + word_p.size * 2
                      + adj_p.size * 2 + w1_b.size * 2 + w2_b.size * 2
                      + b * C_PAD * 4)

    vmem_spec = lambda: pl.BlockSpec(memory_space=pltpu.MemorySpace.VMEM)
    out_pad = pl.pallas_call(
        _make_fused_kernel(b, hw),
        out_shape=jax.ShapeDtypeStruct((b, C_PAD), jnp.float32),
        in_specs=[vmem_spec() for _ in range(6)],
        out_specs=vmem_spec(),
        compiler_params=pltpu.CompilerParams(
            vmem_limit_bytes=32 * 1024 * 1024),
        cost_estimate=pl.CostEstimate(
            flops=flops, transcendentals=0, bytes_accessed=bytes_accessed),
    )(x3, w_stem_b, word_p, adj_p, w1_b, w2_b)

    # TODO(synk): full-scale plan (80 classes, HID=1024, FEAT=2048, large B):
    # add a leading batch grid axis marked "parallel" (v7x's two TensorCores),
    # keep adj/word/w2 resident via constant index_maps with
    # pipeline_mode=pl.Buffered(1) (don't double-buffer the ~4 MiB bf16 w2),
    # raise vmem_limit_bytes explicitly (v7x 64 MiB physical / 32 MiB default
    # scoped, v5e 16 MiB default scoped), re-associate the GCN matmuls to
    # (adj @ word) @ W1 / (adj @ x1) @ W2, and compute the batch-independent
    # x2 once in a separate tiny call -- NOT pl.when(pid==0) on a parallel
    # axis, which would leave the second TensorCore's copy uninitialized.
    return out_pad[:, :NUM_CLASSES]


# ---------------------------------------------------------------------------
# Glue: adjacency construction (gen_A / gen_adj), deterministic & synthetic
# ---------------------------------------------------------------------------
def gen_A_synthetic(num_classes, t, key):
    # TODO(synk): original gen_A loads co-occurrence stats from a pickle file;
    # we synthesize deterministic stats and apply the identical math.
    k1, k2 = jax.random.split(key)
    nums = jax.random.randint(k1, (num_classes,), 50, 200).astype(jnp.float32)
    co = jax.random.randint(k2, (num_classes, num_classes), 0, 100).astype(
        jnp.float32)
    _adj = co / nums[:, None]
    _adj = jnp.where(_adj < t, 0.0, 1.0)
    _adj = _adj * 0.25 / (_adj.sum(0, keepdims=True) + 1e-6)
    _adj = _adj + jnp.eye(num_classes, dtype=jnp.float32)
    return _adj


def gen_adj(A):
    D = jnp.power(A.sum(1), -0.5)
    D = jnp.diag(D)
    return (A @ D).T @ D


# ---------------------------------------------------------------------------
# Pure-JAX f32 reference for verification
# ---------------------------------------------------------------------------
def reference(x_nchw, w_stem, word, adj, w1, w2):
    b, c, h, w = x_nchw.shape
    xc = jnp.transpose(x_nchw, (0, 2, 3, 1)).reshape(b, h * w, c)
    feat = (xc @ w_stem).max(axis=1)
    x1 = adj @ (word @ w1)
    x1 = jnp.where(x1 >= 0.0, x1, 0.2 * x1)
    x2 = adj @ (x1 @ w2)
    return feat @ x2.T


if __name__ == "__main__":
    key = jax.random.PRNGKey(0)
    ks = jax.random.split(key, 6)

    # deterministic example inputs / parameters
    x = jax.random.normal(ks[0], (B, CIN, H, W), jnp.float32)
    w_stem = 0.1 * jax.random.normal(ks[1], (CIN, FEAT_DIM), jnp.float32)
    word = jax.random.normal(ks[2], (NUM_CLASSES, WORD_DIM), jnp.float32)

    # GraphConvolution.reset_parameters: U(-1/sqrt(out), 1/sqrt(out))
    stdv1 = 1.0 / (HID ** 0.5)
    w1 = jax.random.uniform(ks[3], (WORD_DIM, HID), jnp.float32, -stdv1, stdv1)
    stdv2 = 1.0 / (FEAT_DIM ** 0.5)
    w2 = jax.random.uniform(ks[4], (HID, FEAT_DIM), jnp.float32, -stdv2, stdv2)

    A = gen_A_synthetic(NUM_CLASSES, 0.4, ks[5])
    adj = gen_adj(A)

    # constant prep done ONCE (hoisted out of the per-call path)
    params = jax.block_until_ready(prepare_params(w_stem, word, adj, w1, w2))

    # fused forward
    out = mlgcn_forward(x, *params)                      # (B, NUM_CLASSES)
    out = jax.block_until_ready(out)

    ref = reference(x, w_stem, word, adj, w1, w2)
    assert out.shape == (B, NUM_CLASSES)
    # bf16 matmul operands with f32 accumulation -> loosened tolerance.
    max_err = float(jnp.max(jnp.abs(out - ref)))
    assert jnp.allclose(out, ref, atol=1e-1, rtol=1e-2), (
        f"kernel/reference mismatch, max abs err={max_err}")
    print("KERNEL_OK")
</pallas_src>

<mosaic_0001>
module attributes {stable_mosaic.version = 11 : i64} {
  func.func @kernel(%arg0: memref<2x3x256xf32, #tpu.memory_space<vmem>>, %arg1: memref<3x128xbf16, #tpu.memory_space<vmem>>, %arg2: memref<128x32xbf16, #tpu.memory_space<vmem>>, %arg3: memref<128x128xbf16, #tpu.memory_space<vmem>>, %arg4: memref<32x64xbf16, #tpu.memory_space<vmem>>, %arg5: memref<64x128xbf16, #tpu.memory_space<vmem>>, %arg6: memref<2x128xf32, #tpu.memory_space<vmem>>) attributes {dimension_semantics = [], scalar_prefetch = 0 : i64, scratch_operands = 0 : i64, tpu.core_type = #tpu.core_type<tc>} {
    %c0 = arith.constant 0 : index
    %c0_0 = arith.constant 0 : index
    %0 = vector.load %arg1[%c0, %c0_0] : memref<3x128xbf16, #tpu.memory_space<vmem>>, vector<3x128xbf16>
    %cst = arith.constant 0xFF800000 : f32
    %1 = vector.broadcast %cst : f32 to vector<1x128xf32>
    %c0_i32 = arith.constant 0 : i32
    %c128_i32 = arith.constant 128 : i32
    %2 = arith.muli %c0_i32, %c128_i32 : i32
    %3 = tpu.assume_multiple %2, 128 : i32
    %c0_1 = arith.constant 0 : index
    %c0_2 = arith.constant 0 : index
    %4 = arith.index_cast %3 : i32 to index
    %5 = vector.load %arg0[%c0_1, %c0_2, %4] : memref<2x3x256xf32, #tpu.memory_space<vmem>>, vector<1x3x128xf32>
    %6 = vector.shape_cast %5 : vector<1x3x128xf32> to vector<3x128xf32>
    %7 = arith.truncf %6 : vector<3x128xf32> to vector<3x128xbf16>
    %cst_3 = arith.constant dense<0.000000e+00> : vector<128x128xf32>
    %8 = tpu.matmul %7, %0, %cst_3 {dimension_numbers = #tpu.dot_dimension_numbers<[0], [0], [1], [1], [0, 1, 1, 1], [], []>} : vector<3x128xbf16>, vector<3x128xbf16>, vector<128x128xf32> -> vector<128x128xf32>
    %cst_4 = arith.constant dense<0xFF800000> : vector<128xf32>
    %9 = vector.multi_reduction <maximumf>, %8, %cst_4 [0] : vector<128x128xf32> to vector<128xf32>
    %10 = vector.shape_cast %9 : vector<128xf32> to vector<1x128xf32>
    %11 = arith.maximumf %1, %10 : vector<1x128xf32>
    %c1_i32 = arith.constant 1 : i32
    %c128_i32_5 = arith.constant 128 : i32
    %12 = arith.muli %c1_i32, %c128_i32_5 : i32
    %13 = tpu.assume_multiple %12, 128 : i32
    %c0_6 = arith.constant 0 : index
    %c0_7 = arith.constant 0 : index
    %14 = arith.index_cast %13 : i32 to index
    %15 = vector.load %arg0[%c0_6, %c0_7, %14] : memref<2x3x256xf32, #tpu.memory_space<vmem>>, vector<1x3x128xf32>
    %16 = vector.shape_cast %15 : vector<1x3x128xf32> to vector<3x128xf32>
    %17 = arith.truncf %16 : vector<3x128xf32> to vector<3x128xbf16>
    %cst_8 = arith.constant dense<0.000000e+00> : vector<128x128xf32>
    %18 = tpu.matmul %17, %0, %cst_8 {dimension_numbers = #tpu.dot_dimension_numbers<[0], [0], [1], [1], [0, 1, 1, 1], [], []>} : vector<3x128xbf16>, vector<3x128xbf16>, vector<128x128xf32> -> vector<128x128xf32>
    %cst_9 = arith.constant dense<0xFF800000> : vector<128xf32>
    %19 = vector.multi_reduction <maximumf>, %18, %cst_9 [0] : vector<128x128xf32> to vector<128xf32>
    %20 = vector.shape_cast %19 : vector<128xf32> to vector<1x128xf32>
    %21 = arith.maximumf %11, %20 : vector<1x128xf32>
    %c2_i32 = arith.constant 2 : i32
    %cst_10 = arith.constant 0xFF800000 : f32
    %22 = vector.broadcast %cst_10 : f32 to vector<1x128xf32>
    %c0_i32_11 = arith.constant 0 : i32
    %c128_i32_12 = arith.constant 128 : i32
    %23 = arith.muli %c0_i32_11, %c128_i32_12 : i32
    %24 = tpu.assume_multiple %23, 128 : i32
    %c1 = arith.constant 1 : index
    %c0_13 = arith.constant 0 : index
    %25 = arith.index_cast %24 : i32 to index
    %26 = vector.load %arg0[%c1, %c0_13, %25] : memref<2x3x256xf32, #tpu.memory_space<vmem>>, vector<1x3x128xf32>
    %27 = vector.shape_cast %26 : vector<1x3x128xf32> to vector<3x128xf32>
    %28 = arith.truncf %27 : vector<3x128xf32> to vector<3x128xbf16>
    %cst_14 = arith.constant dense<0.000000e+00> : vector<128x128xf32>
    %29 = tpu.matmul %28, %0, %cst_14 {dimension_numbers = #tpu.dot_dimension_numbers<[0], [0], [1], [1], [0, 1, 1, 1], [], []>} : vector<3x128xbf16>, vector<3x128xbf16>, vector<128x128xf32> -> vector<128x128xf32>
    %cst_15 = arith.constant dense<0xFF800000> : vector<128xf32>
    %30 = vector.multi_reduction <maximumf>, %29, %cst_15 [0] : vector<128x128xf32> to vector<128xf32>
    %31 = vector.shape_cast %30 : vector<128xf32> to vector<1x128xf32>
    %32 = arith.maximumf %22, %31 : vector<1x128xf32>
    %c1_i32_16 = arith.constant 1 : i32
    %c128_i32_17 = arith.constant 128 : i32
    %33 = arith.muli %c1_i32_16, %c128_i32_17 : i32
    %34 = tpu.assume_multiple %33, 128 : i32
    %c1_18 = arith.constant 1 : index
    %c0_19 = arith.constant 0 : index
    %35 = arith.index_cast %34 : i32 to index
    %36 = vector.load %arg0[%c1_18, %c0_19, %35] : memref<2x3x256xf32, #tpu.memory_space<vmem>>, vector<1x3x128xf32>
    %37 = vector.shape_cast %36 : vector<1x3x128xf32> to vector<3x128xf32>
    %38 = arith.truncf %37 : vector<3x128xf32> to vector<3x128xbf16>
    %cst_20 = arith.constant dense<0.000000e+00> : vector<128x128xf32>
    %39 = tpu.matmul %38, %0, %cst_20 {dimension_numbers = #tpu.dot_dimension_numbers<[0], [0], [1], [1], [0, 1, 1, 1], [], []>} : vector<3x128xbf16>, vector<3x128xbf16>, vector<128x128xf32> -> vector<128x128xf32>
    %cst_21 = arith.constant dense<0xFF800000> : vector<128xf32>
    %40 = vector.multi_reduction <maximumf>, %39, %cst_21 [0] : vector<128x128xf32> to vector<128xf32>
    %41 = vector.shape_cast %40 : vector<128xf32> to vector<1x128xf32>
    %42 = arith.maximumf %32, %41 : vector<1x128xf32>
    %c2_i32_22 = arith.constant 2 : i32
    %43 = tpu.concatenate %21, %42 in 0 : vector<1x128xf32>, vector<1x128xf32> -> vector<2x128xf32>
    %c0_23 = arith.constant 0 : index
    %c0_24 = arith.constant 0 : index
    %44 = vector.load %arg2[%c0_23, %c0_24] : memref<128x32xbf16, #tpu.memory_space<vmem>>, vector<128x32xbf16>
    %c0_25 = arith.constant 0 : index
    %c0_26 = arith.constant 0 : index
    %45 = vector.load %arg4[%c0_25, %c0_26] : memref<32x64xbf16, #tpu.memory_space<vmem>>, vector<32x64xbf16>
    %cst_27 = arith.constant dense<0.000000e+00> : vector<128x64xf32>
    %46 = tpu.matmul %44, %45, %cst_27 {dimension_numbers = #tpu.dot_dimension_numbers<[1], [0], [0], [1], [0, 0, 1, 1], [], []>} : vector<128x32xbf16>, vector<32x64xbf16>, vector<128x64xf32> -> vector<128x64xf32>
    %c0_28 = arith.constant 0 : index
    %c0_29 = arith.constant 0 : index
    %47 = vector.load %arg3[%c0_28, %c0_29] : memref<128x128xbf16, #tpu.memory_space<vmem>>, vector<128x128xbf16>
    %48 = arith.truncf %46 : vector<128x64xf32> to vector<128x64xbf16>
    %cst_30 = arith.constant dense<0.000000e+00> : vector<128x64xf32>
    %49 = tpu.matmul %47, %48, %cst_30 {dimension_numbers = #tpu.dot_dimension_numbers<[1], [0], [0], [1], [0, 0, 1, 1], [], []>} : vector<128x128xbf16>, vector<128x64xbf16>, vector<128x64xf32> -> vector<128x64xf32>
    %cst_31 = arith.constant 0.000000e+00 : f32
    %50 = vector.broadcast %cst_31 : f32 to vector<128x64xf32>
    %51 = arith.cmpf oge, %49, %50 : vector<128x64xf32>
    %cst_32 = arith.constant 2.000000e-01 : f32
    %52 = vector.broadcast %cst_32 : f32 to vector<128x64xf32>
    %53 = arith.mulf %52, %49 : vector<128x64xf32>
    %54 = arith.select %51, %49, %53 : vector<128x64xi1>, vector<128x64xf32>
    %55 = arith.truncf %54 : vector<128x64xf32> to vector<128x64xbf16>
    %c0_33 = arith.constant 0 : index
    %c0_34 = arith.constant 0 : index
    %56 = vector.load %arg5[%c0_33, %c0_34] : memref<64x128xbf16, #tpu.memory_space<vmem>>, vector<64x128xbf16>
    %cst_35 = arith.constant dense<0.000000e+00> : vector<128x128xf32>
    %57 = tpu.matmul %55, %56, %cst_35 {dimension_numbers = #tpu.dot_dimension_numbers<[1], [0], [0], [1], [0, 0, 1, 1], [], []>} : vector<128x64xbf16>, vector<64x128xbf16>, vector<128x128xf32> -> vector<128x128xf32>
    %c0_36 = arith.constant 0 : index
    %c0_37 = arith.constant 0 : index
    %58 = vector.load %arg3[%c0_36, %c0_37] : memref<128x128xbf16, #tpu.memory_space<vmem>>, vector<128x128xbf16>
    %59 = arith.truncf %57 : vector<128x128xf32> to vector<128x128xbf16>
    %cst_38 = arith.constant dense<0.000000e+00> : vector<128x128xf32>
    %60 = tpu.matmul %58, %59, %cst_38 {dimension_numbers = #tpu.dot_dimension_numbers<[1], [0], [0], [1], [0, 0, 1, 1], [], []>} : vector<128x128xbf16>, vector<128x128xbf16>, vector<128x128xf32> -> vector<128x128xf32>
    %61 = arith.truncf %43 : vector<2x128xf32> to vector<2x128xbf16>
    %62 = arith.truncf %60 : vector<128x128xf32> to vector<128x128xbf16>
    %cst_39 = arith.constant dense<0.000000e+00> : vector<2x128xf32>
    %63 = tpu.matmul %61, %62, %cst_39 {dimension_numbers = #tpu.dot_dimension_numbers<[1], [1], [0], [0], [0, 0, 1, 0], [], []>} : vector<2x128xbf16>, vector<128x128xbf16>, vector<2x128xf32> -> vector<2x128xf32>
    %c0_40 = arith.constant 0 : index
    %c0_41 = arith.constant 0 : index
    %64 = vector.load %arg6[%c0_40, %c0_41] : memref<2x128xf32, #tpu.memory_space<vmem>>, vector<2x128xf32>
    tpu.vector_store %arg6[%c0_40, %c0_41], %63 {strides = array<i32>} : memref<2x128xf32, #tpu.memory_space<vmem>>, vector<2x128xf32>,
    return
  }
}

</mosaic_0001>

<llo_original>
// kernel: mlgcn_forward.1
$region0: #{mlgcn_forward.1}
  #allocation0 [shape = 'u32[]', space=smem, size = 0x4, offset = 0x4, fixed_abs, tag = 'smem constant byte address 0x4 - core index']
  #allocation1 [shape = 'u32[144,128]{1,0:T(1,128)}', space=vmem, size = 0x12000, scoped, tag = 'internal scratch']
  %s0 = inlined_call_operand.vmem [shape: f32[2,3,256], index: 0, kind: input, shape index: {}]
  %s1 = inlined_call_operand.vmem [shape: bf16[3,128], index: 1, kind: input, shape index: {}]
  %s2 = inlined_call_operand.vmem [shape: bf16[128,32], index: 2, kind: input, shape index: {}]
  %s3 = inlined_call_operand.vmem [shape: bf16[128,128], index: 3, kind: input, shape index: {}]
  %s4 = inlined_call_operand.vmem [shape: bf16[32,64], index: 4, kind: input, shape index: {}]
  %s5 = inlined_call_operand.vmem [shape: bf16[64,128], index: 5, kind: input, shape index: {}]
  %s6 = inlined_call_operand.hbm [shape: f32[2,128], index: 6, kind: output, shape index: {}]
  %s7 = sld [smem:[#allocation0]]
  $region34: #{mlgcn_forward.1} parent=0
    _
  %s9 = ssub.s32 1, %s7
  %s10 = scalar_select 0, %s9, %s7
  $region1: #{mlgcn_forward.1} parent=0
    #allocation2 [shape = 'u8[1024]{0}', space=vmem, size = 0x400, scoped, tag = 'output window, operand 0, single buffered']
    #allocation3 [shape = 's32[1]{0}', space=sflag, size = 0x4, scoped, tag = 'scoped memory for mlgcn_forward.1']
    %11 = vsyncpa [#allocation3], 0
    // Predicated region
    $region2: #{mlgcn_forward.1} parent=1 // pred_check
      _
    $region3: #{mlgcn_forward.1} parent=1 // pred_check_branch
      %13 = sbr.rel (0) target = $region5
    $region4: #{mlgcn_forward.1} parent=1 // pred_region
      _
    $region5: #{mlgcn_forward.1} parent=1 // pred_fallthru
      _
    // Predicated region
    $region6: #{mlgcn_forward.1} parent=1 // pred_check
      _
    $region7: #{mlgcn_forward.1} parent=1 // pred_check_branch
      %15 = sbr.rel (0) target = $region9
    $region8: #{mlgcn_forward.1} parent=1 // pred_region
      _
    $region9: #{mlgcn_forward.1} parent=1 // pred_fallthru
      _
    // Predicated region
    $region10: #{mlgcn_forward.1} parent=1 // pred_check
      _
    $region11: #{mlgcn_forward.1} parent=1 // pred_check_branch
      %17 = sbr.rel (0) target = $region13
    $region12: #{mlgcn_forward.1} parent=1 // pred_region
      _
    $region13: #{mlgcn_forward.1} parent=1 // pred_fallthru
      _
    // Predicated region
    $region14: #{mlgcn_forward.1} parent=1 // pred_check
      _
    $region15: #{mlgcn_forward.1} parent=1 // pred_check_branch
      %19 = sbr.rel (0) target = $region17
    $region16: #{mlgcn_forward.1} parent=1 // pred_region
      _
    $region17: #{mlgcn_forward.1} parent=1 // pred_fallthru
      _
    // Predicated region
    $region18: #{mlgcn_forward.1} parent=1 // pred_check
      _
    $region19: #{mlgcn_forward.1} parent=1 // pred_check_branch
      %21 = sbr.rel (0) target = $region21
    $region20: #{mlgcn_forward.1} parent=1 // pred_region
      _
    $region21: #{mlgcn_forward.1} parent=1 // pred_fallthru
      _
    // Predicated region
    $region22: #{mlgcn_forward.1} parent=1 // pred_check
      _
    $region23: #{mlgcn_forward.1} parent=1 // pred_check_branch
      %23 = sbr.rel (0) target = $region25
    $region24: #{mlgcn_forward.1} parent=1 // pred_region
      _
    $region25: #{mlgcn_forward.1} parent=1 // pred_fallthru
      _
    %v25 = vld [vmem:[%s1] sm:$0x3]
    %v26 = vld [vmem:[%s0] sm:$0x7]
    %v27 = vpack.c.bf16 %v26, %v26
    %28 = vxpose.xlu0.c.b16.start [1/8] %v27, 128
    %29 = vxpose.xlu0.c.b16.cont [2/8] 0, 128
    %30 = vxpose.xlu0.c.b16.cont [3/8] 0, 128
    %31 = vxpose.xlu0.c.b16.cont [4/8] 0, 128
    %32 = vxpose.xlu0.c.b16.cont [5/8] 0, 128
    %33 = vxpose.xlu0.c.b16.cont [6/8] 0, 128
    %34 = vxpose.xlu0.c.b16.cont [7/8] 0, 128
    %35 = vxpose.xlu0.c.b16.end [8/8] 0, 128
    %v36 = vpop.trf.xlu0
    %v37 = vpop.trf.xlu0
    %v38 = vpop.trf.xlu0
    %v39 = vpop.trf.xlu0
    %v40 = vpop.trf.xlu0
    %v41 = vpop.trf.xlu0
    %v42 = vpop.trf.xlu0
    %v43 = vpop.trf.xlu0
    %vm44 = vcmask 23552
    %v46 = vsel %vm44, %v36, 0
    %v49 = vsel %vm44, %v37, 0
    %v52 = vsel %vm44, %v38, 0
    %v55 = vsel %vm44, %v39, 0
    %v58 = vsel %vm44, %v40, 0
    %v61 = vsel %vm44, %v41, 0
    %v64 = vsel %vm44, %v42, 0
    %v67 = vsel %vm44, %v43, 0
    %vm69 = vcmask 1040384
    %vm70 = vcmask 1041408
    %v71 = vsel %vm69, 4294967295, 65535
    %v72 = vsel %vm70, %v71, 0
    %v74 = vand.u32 %v25, %v72
    %76 = vmatprep.subr.bf16.mxu0 0
    %77 = vmatpush1.bf16.msra.mxu0 %v74
    %78 = vmatprep.subr.bf16.mxu0 0
    %79 = vmatpush1.bf16.msra.mxu0 0
    %80 = vmatprep.subr.bf16.mxu0 0
    %81 = vmatpush1.bf16.msra.mxu0 0
    %82 = vmatprep.subr.bf16.mxu0 0
    %83 = vmatpush1.bf16.msra.mxu0 0
    %84 = vmatprep.subr.bf16.mxu0 0
    %85 = vmatpush1.bf16.msra.mxu0 0
    %86 = vmatprep.subr.bf16.mxu0 0
    %87 = vmatpush1.bf16.msra.mxu0 0
    %88 = vmatprep.subr.bf16.mxu0 0
    %89 = vmatpush1.bf16.msra.mxu0 0
    %90 = vmatprep.subr.bf16.mxu0 0
    %91 = vmatpush1.bf16.msra.mxu0 0
    %92 = vmatprep.subr.bf16.mxu0 0
    %93 = vmatpush1.bf16.msra.mxu0 0
    %94 = vmatprep.subr.bf16.mxu0 0
    %95 = vmatpush1.bf16.msra.mxu0 0
    %96 = vmatprep.subr.bf16.mxu0 0
    %97 = vmatpush1.bf16.msra.mxu0 0
    %98 = vmatprep.subr.bf16.mxu0 0
    %99 = vmatpush1.bf16.msra.mxu0 0
    %100 = vmatprep.subr.bf16.mxu0 0
    %101 = vmatpush1.bf16.msra.mxu0 0
    %102 = vmatprep.subr.bf16.mxu0 0
    %103 = vmatpush1.bf16.msra.mxu0 0
    %104 = vmatprep.subr.bf16.mxu0 0
    %105 = vmatpush1.bf16.msra.mxu0 0
    %106 = vmatprep.subr.bf16.mxu0 0
    %107 = vmatpush1.bf16.msra.mxu0 0
    %108 = vmatprep.mubr.bf16.mxu0 0
    %109 = vmatmul.mubr.bf16.gmra.mrb[0].mxu0 %v46
    %v110 = vpop.f32.mrb[0].mxu0
    %v111 = vadd.f32 0.0, %v110
    %v112 = vpop.f32.mrb[0].mxu0
    %v113 = vpop.f32.mrb[0].mxu0
    %v114 = vadd.f32 0.0, %v113
    %v115 = vpop.f32.mrb[0].mxu0
    %116 = vmatprep.mubr.bf16.mxu0 0
    %117 = vmatmul.mubr.bf16.gmra.mrb[0].mxu0 %v49
    %v118 = vpop.f32.mrb[0].mxu0
    %v119 = vadd.f32 0.0, %v118
    %v120 = vpop.f32.mrb[0].mxu0
    %v121 = vpop.f32.mrb[0].mxu0
    %v122 = vadd.f32 0.0, %v121
    %v123 = vpop.f32.mrb[0].mxu0
    %124 = vmatprep.mubr.bf16.mxu0 0
    %125 = vmatmul.mubr.bf16.gmra.mrb[0].mxu0 %v52
    %v126 = vpop.f32.mrb[0].mxu0
    %v127 = vadd.f32 0.0, %v126
    %v128 = vpop.f32.mrb[0].mxu0
    %v129 = vpop.f32.mrb[0].mxu0
    %v130 = vadd.f32 0.0, %v129
    %v131 = vpop.f32.mrb[0].mxu0
    %132 = vmatprep.mubr.bf16.mxu0 0
    %133 = vmatmul.mubr.bf16.gmra.mrb[0].mxu0 %v55
    %v134 = vpop.f32.mrb[0].mxu0
    %v135 = vadd.f32 0.0, %v134
    %v136 = vpop.f32.mrb[0].mxu0
    %v137 = vpop.f32.mrb[0].mxu0
    %v138 = vadd.f32 0.0, %v137
    %v139 = vpop.f32.mrb[0].mxu0
    %140 = vmatprep.mubr.bf16.mxu0 0
    %141 = vmatmul.mubr.bf16.gmra.mrb[0].mxu0 %v58
    %v142 = vpop.f32.mrb[0].mxu0
    %v143 = vadd.f32 0.0, %v142
    %v144 = vpop.f32.mrb[0].mxu0
    %v145 = vpop.f32.mrb[0].mxu0
    %v146 = vadd.f32 0.0, %v145
    %v147 = vpop.f32.mrb[0].mxu0
    %148 = vmatprep.mubr.bf16.mxu0 0
    %149 = vmatmul.mubr.bf16.gmra.mrb[0].mxu0 %v61
    %v150 = vpop.f32.mrb[0].mxu0
    %v151 = vadd.f32 0.0, %v150
    %v152 = vpop.f32.mrb[0].mxu0
    %v153 = vpop.f32.mrb[0].mxu0
    %v154 = vadd.f32 0.0, %v153
    %v155 = vpop.f32.mrb[0].mxu0
    %156 = vmatprep.mubr.bf16.mxu0 0
    %157 = vmatmul.mubr.bf16.gmra.mrb[0].mxu0 %v64
    %v158 = vpop.f32.mrb[0].mxu0
    %v159 = vadd.f32 0.0, %v158
    %v160 = vpop.f32.mrb[0].mxu0
    %v161 = vpop.f32.mrb[0].mxu0
    %v162 = vadd.f32 0.0, %v161
    %v163 = vpop.f32.mrb[0].mxu0
    %164 = vmatprep.mubr.bf16.mxu0 0
    %165 = vmatmul.mubr.bf16.gmra.mrb[0].mxu0 %v67
    %v166 = vpop.f32.mrb[0].mxu0
    %v167 = vadd.f32 0.0, %v166
    %v168 = vpop.f32.mrb[0].mxu0
    %v169 = vpop.f32.mrb[0].mxu0
    %v170 = vadd.f32 0.0, %v169
    %v171 = vpop.f32.mrb[0].mxu0
    %172 = vdwg.mxu0
    %v173 = vmax.f32 %v111, %v127
    %v174 = vmax.f32 %v114, %v130
    %v175 = vmax.f32 %v119, %v135
    %v176 = vmax.f32 %v122, %v138
    %v177 = vmax.f32 %v173, %v143
    %v178 = vmax.f32 %v174, %v146
    %v179 = vmax.f32 %v175, %v151
    %v180 = vmax.f32 %v176, %v154
    %v181 = vmax.f32 %v177, %v159
    %v182 = vmax.f32 %v178, %v162
    %v183 = vmax.f32 %v179, %v167
    %v184 = vmax.f32 %v180, %v170
    %v185 = vmax.f32 %v181, %v182
    %v186 = vmax.f32 %v183, %v184
    %v187 = vmax.f32 %v185, %v186
    %v188 = vrot.slane %v187, 4
    %v189 = vmax.f32 %v187, %v188
    %v190 = vrot.slane %v189, 2
    %v191 = vmax.f32 %v189, %v190
    %v192 = vrot.slane %v191, 1
    %v193 = vmax.f32 %v191, %v192
    %s194 = scalar_lea.vmem %s0, 4
    %v195 = vld [vmem:[%s194] sm:$0x7]
    %v196 = vpack.c.bf16 %v195, %v195
    %197 = vxpose.xlu0.c.b16.start [1/8] %v196, 128
    %198 = vxpose.xlu0.c.b16.cont [2/8] 0, 128
    %199 = vxpose.xlu0.c.b16.cont [3/8] 0, 128
    %200 = vxpose.xlu0.c.b16.cont [4/8] 0, 128
    %201 = vxpose.xlu0.c.b16.cont [5/8] 0, 128
    %202 = vxpose.xlu0.c.b16.cont [6/8] 0, 128
    %203 = vxpose.xlu0.c.b16.cont [7/8] 0, 128
    %204 = vxpose.xlu0.c.b16.end [8/8] 0, 128
    %v205 = vpop.trf.xlu0
    %v206 = vpop.trf.xlu0
    %v207 = vpop.trf.xlu0
    %v208 = vpop.trf.xlu0
    %v209 = vpop.trf.xlu0
    %v210 = vpop.trf.xlu0
    %v211 = vpop.trf.xlu0
    %v212 = vpop.trf.xlu0
    %v214 = vsel %vm44, %v205, 0
    %v217 = vsel %vm44, %v206, 0
    %v220 = vsel %vm44, %v207, 0
    %v223 = vsel %vm44, %v208, 0
    %v226 = vsel %vm44, %v209, 0
    %v229 = vsel %vm44, %v210, 0
    %v232 = vsel %vm44, %v211, 0
    %v235 = vsel %vm44, %v212, 0
    %237 = vmatprep.subr.bf16.mxu0 0
    %238 = vmatpush1.bf16.msra.mxu0 %v74
    %239 = vmatprep.subr.bf16.mxu0 0
    %240 = vmatpush1.bf16.msra.mxu0 0
    %241 = vmatprep.subr.bf16.mxu0 0
    %242 = vmatpush1.bf16.msra.mxu0 0
    %243 = vmatprep.subr.bf16.mxu0 0
    %244 = vmatpush1.bf16.msra.mxu0 0
    %245 = vmatprep.subr.bf16.mxu0 0
    %246 = vmatpush1.bf16.msra.mxu0 0
    %247 = vmatprep.subr.bf16.mxu0 0
    %248 = vmatpush1.bf16.msra.mxu0 0
    %249 = vmatprep.subr.bf16.mxu0 0
    %250 = vmatpush1.bf16.msra.mxu0 0
    %251 = vmatprep.subr.bf16.mxu0 0
    %252 = vmatpush1.bf16.msra.mxu0 0
    %253 = vmatprep.subr.bf16.mxu0 0
    %254 = vmatpush1.bf16.msra.mxu0 0
    %255 = vmatprep.subr.bf16.mxu0 0
    %256 = vmatpush1.bf16.msra.mxu0 0
    %257 = vmatprep.subr.bf16.mxu0 0
    %258 = vmatpush1.bf16.msra.mxu0 0
    %259 = vmatprep.subr.bf16.mxu0 0
    %260 = vmatpush1.bf16.msra.mxu0 0
    %261 = vmatprep.subr.bf16.mxu0 0
    %262 = vmatpush1.bf16.msra.mxu0 0
    %263 = vmatprep.subr.bf16.mxu0 0
    %264 = vmatpush1.bf16.msra.mxu0 0
    %265 = vmatprep.subr.bf16.mxu0 0
    %266 = vmatpush1.bf16.msra.mxu0 0
    %267 = vmatprep.subr.bf16.mxu0 0
    %268 = vmatpush1.bf16.msra.mxu0 0
    %269 = vmatprep.mubr.bf16.mxu0 0
    %270 = vmatmul.mubr.bf16.gmra.mrb[0].mxu0 %v214
    %v271 = vpop.f32.mrb[0].mxu0
    %v272 = vadd.f32 0.0, %v271
    %v273 = vpop.f32.mrb[0].mxu0
    %v274 = vpop.f32.mrb[0].mxu0
    %v275 = vadd.f32 0.0, %v274
    %v276 = vpop.f32.mrb[0].mxu0
    %277 = vmatprep.mubr.bf16.mxu0 0
    %278 = vmatmul.mubr.bf16.gmra.mrb[0].mxu0 %v217
    %v279 = vpop.f32.mrb[0].mxu0
    %v280 = vadd.f32 0.0, %v279
    %v281 = vpop.f32.mrb[0].mxu0
    %v282 = vpop.f32.mrb[0].mxu0
    %v283 = vadd.f32 0.0, %v282
    %v284 = vpop.f32.mrb[0].mxu0
    %285 = vmatprep.mubr.bf16.mxu0 0
    %286 = vmatmul.mubr.bf16.gmra.mrb[0].mxu0 %v220
    %v287 = vpop.f32.mrb[0].mxu0
    %v288 = vadd.f32 0.0, %v287
    %v289 = vpop.f32.mrb[0].mxu0
    %v290 = vpop.f32.mrb[0].mxu0
    %v291 = vadd.f32 0.0, %v290
    %v292 = vpop.f32.mrb[0].mxu0
    %293 = vmatprep.mubr.bf16.mxu0 0
    %294 = vmatmul.mubr.bf16.gmra.mrb[0].mxu0 %v223
    %v295 = vpop.f32.mrb[0].mxu0
    %v296 = vadd.f32 0.0, %v295
    %v297 = vpop.f32.mrb[0].mxu0
    %v298 = vpop.f32.mrb[0].mxu0
    %v299 = vadd.f32 0.0, %v298
    %v300 = vpop.f32.mrb[0].mxu0
    %301 = vmatprep.mubr.bf16.mxu0 0
    %302 = vmatmul.mubr.bf16.gmra.mrb[0].mxu0 %v226
    %v303 = vpop.f32.mrb[0].mxu0
    %v304 = vadd.f32 0.0, %v303
    %v305 = vpop.f32.mrb[0].mxu0
    %v306 = vpop.f32.mrb[0].mxu0
    %v307 = vadd.f32 0.0, %v306
    %v308 = vpop.f32.mrb[0].mxu0
    %309 = vmatprep.mubr.bf16.mxu0 0
    %310 = vmatmul.mubr.bf16.gmra.mrb[0].mxu0 %v229
    %v311 = vpop.f32.mrb[0].mxu0
    %v312 = vadd.f32 0.0, %v311
    %v313 = vpop.f32.mrb[0].mxu0
    %v314 = vpop.f32.mrb[0].mxu0
    %v315 = vadd.f32 0.0, %v314
    %v316 = vpop.f32.mrb[0].mxu0
    %317 = vmatprep.mubr.bf16.mxu0 0
    %318 = vmatmul.mubr.bf16.gmra.mrb[0].mxu0 %v232
    %v319 = vpop.f32.mrb[0].mxu0
    %v320 = vadd.f32 0.0, %v319
    %v321 = vpop.f32.mrb[0].mxu0
    %v322 = vpop.f32.mrb[0].mxu0
    %v323 = vadd.f32 0.0, %v322
    %v324 = vpop.f32.mrb[0].mxu0
    %325 = vmatprep.mubr.bf16.mxu0 0
    %326 = vmatmul.mubr.bf16.gmra.mrb[0].mxu0 %v235
    %v327 = vpop.f32.mrb[0].mxu0
    %v328 = vadd.f32 0.0, %v327
    %v329 = vpop.f32.mrb[0].mxu0
    %v330 = vpop.f32.mrb[0].mxu0
    %v331 = vadd.f32 0.0, %v330
    %v332 = vpop.f32.mrb[0].mxu0
    %333 = vdwg.mxu0
    %v334 = vmax.f32 %v272, %v288
    %v335 = vmax.f32 %v275, %v291
    %v336 = vmax.f32 %v280, %v296
    %v337 = vmax.f32 %v283, %v299
    %v338 = vmax.f32 %v334, %v304
    %v339 = vmax.f32 %v335, %v307
    %v340 = vmax.f32 %v336, %v312
    %v341 = vmax.f32 %v337, %v315
    %v342 = vmax.f32 %v338, %v320
    %v343 = vmax.f32 %v339, %v323
    %v344 = vmax.f32 %v340, %v328
    %v345 = vmax.f32 %v341, %v331
    %v346 = vmax.f32 %v342, %v343
    %v347 = vmax.f32 %v344, %v345
    %v348 = vmax.f32 %v346, %v347
    %v349 = vrot.slane %v348, 4
    %v350 = vmax.f32 %v348, %v349
    %v351 = vrot.slane %v350, 2
    %v352 = vmax.f32 %v350, %v351
    %v353 = vrot.slane %v352, 1
    %v354 = vmax.f32 %v352, %v353
    %v355 = vmax.f32 %v193, %v354
    %s356 = sadd.s32 0, 2
    %s357 = smul.addr %s356, 4
    %s358 = scalar_lea.vmem %s0, %s357
    %v359 = vld [vmem:[%s358] sm:$0x7]
    %v360 = vpack.c.bf16 %v359, %v359
    %361 = vxpose.xlu0.c.b16.start [1/8] %v360, 128
    %362 = vxpose.xlu0.c.b16.cont [2/8] 0, 128
    %363 = vxpose.xlu0.c.b16.cont [3/8] 0, 128
    %364 = vxpose.xlu0.c.b16.cont [4/8] 0, 128
    %365 = vxpose.xlu0.c.b16.cont [5/8] 0, 128
    %366 = vxpose.xlu0.c.b16.cont [6/8] 0, 128
    %367 = vxpose.xlu0.c.b16.cont [7/8] 0, 128
    %368 = vxpose.xlu0.c.b16.end [8/8] 0, 128
    %v369 = vpop.trf.xlu0
    %v370 = vpop.trf.xlu0
    %v371 = vpop.trf.xlu0
    %v372 = vpop.trf.xlu0
    %v373 = vpop.trf.xlu0
    %v374 = vpop.trf.xlu0
    %v375 = vpop.trf.xlu0
    %v376 = vpop.trf.xlu0
    %v378 = vsel %vm44, %v369, 0
    %v381 = vsel %vm44, %v370, 0
    %v384 = vsel %vm44, %v371, 0
    %v387 = vsel %vm44, %v372, 0
    %v390 = vsel %vm44, %v373, 0
    %v393 = vsel %vm44, %v374, 0
    %v396 = vsel %vm44, %v375, 0
    %v399 = vsel %vm44, %v376, 0
    %401 = vmatprep.subr.bf16.mxu0 0
    %402 = vmatpush1.bf16.msra.mxu0 %v74
    %403 = vmatprep.subr.bf16.mxu0 0
    %404 = vmatpush1.bf16.msra.mxu0 0
    %405 = vmatprep.subr.bf16.mxu0 0
    %406 = vmatpush1.bf16.msra.mxu0 0
    %407 = vmatprep.subr.bf16.mxu0 0
    %408 = vmatpush1.bf16.msra.mxu0 0
    %409 = vmatprep.subr.bf16.mxu0 0
    %410 = vmatpush1.bf16.msra.mxu0 0
    %411 = vmatprep.subr.bf16.mxu0 0
    %412 = vmatpush1.bf16.msra.mxu0 0
    %413 = vmatprep.subr.bf16.mxu0 0
    %414 = vmatpush1.bf16.msra.mxu0 0
    %415 = vmatprep.subr.bf16.mxu0 0
    %416 = vmatpush1.bf16.msra.mxu0 0
    %417 = vmatprep.subr.bf16.mxu0 0
    %418 = vmatpush1.bf16.msra.mxu0 0
    %419 = vmatprep.subr.bf16.mxu0 0
    %420 = vmatpush1.bf16.msra.mxu0 0
    %421 = vmatprep.subr.bf16.mxu0 0
    %422 = vmatpush1.bf16.msra.mxu0 0
    %423 = vmatprep.subr.bf16.mxu0 0
    %424 = vmatpush1.bf16.msra.mxu0 0
    %425 = vmatprep.subr.bf16.mxu0 0
    %426 = vmatpush1.bf16.msra.mxu0 0
    %427 = vmatprep.subr.bf16.mxu0 0
    %428 = vmatpush1.bf16.msra.mxu0 0
    %429 = vmatprep.subr.bf16.mxu0 0
    %430 = vmatpush1.bf16.msra.mxu0 0
    %431 = vmatprep.subr.bf16.mxu0 0
    %432 = vmatpush1.bf16.msra.mxu0 0
    %433 = vmatprep.mubr.bf16.mxu0 0
    %434 = vmatmul.mubr.bf16.gmra.mrb[0].mxu0 %v378
    %v435 = vpop.f32.mrb[0].mxu0
    %v436 = vadd.f32 0.0, %v435
    %v437 = vpop.f32.mrb[0].mxu0
    %v438 = vpop.f32.mrb[0].mxu0
    %v439 = vadd.f32 0.0, %v438
    %v440 = vpop.f32.mrb[0].mxu0
    %441 = vmatprep.mubr.bf16.mxu0 0
    %442 = vmatmul.mubr.bf16.gmra.mrb[0].mxu0 %v381
    %v443 = vpop.f32.mrb[0].mxu0
    %v444 = vadd.f32 0.0, %v443
    %v445 = vpop.f32.mrb[0].mxu0
    %v446 = vpop.f32.mrb[0].mxu0
    %v447 = vadd.f32 0.0, %v446
    %v448 = vpop.f32.mrb[0].mxu0
    %449 = vmatprep.mubr.bf16.mxu0 0
    %450 = vmatmul.mubr.bf16.gmra.mrb[0].mxu0 %v384
    %v451 = vpop.f32.mrb[0].mxu0
    %v452 = vadd.f32 0.0, %v451
    %v453 = vpop.f32.mrb[0].mxu0
    %v454 = vpop.f32.mrb[0].mxu0
    %v455 = vadd.f32 0.0, %v454
    %v456 = vpop.f32.mrb[0].mxu0
    %457 = vmatprep.mubr.bf16.mxu0 0
    %458 = vmatmul.mubr.bf16.gmra.mrb[0].mxu0 %v387
    %v459 = vpop.f32.mrb[0].mxu0
    %v460 = vadd.f32 0.0, %v459
    %v461 = vpop.f32.mrb[0].mxu0
    %v462 = vpop.f32.mrb[0].mxu0
    %v463 = vadd.f32 0.0, %v462
    %v464 = vpop.f32.mrb[0].mxu0
    %465 = vmatprep.mubr.bf16.mxu0 0
    %466 = vmatmul.mubr.bf16.gmra.mrb[0].mxu0 %v390
    %v467 = vpop.f32.mrb[0].mxu0
    %v468 = vadd.f32 0.0, %v467
    %v469 = vpop.f32.mrb[0].mxu0
    %v470 = vpop.f32.mrb[0].mxu0
    %v471 = vadd.f32 0.0, %v470
    %v472 = vpop.f32.mrb[0].mxu0
    %473 = vmatprep.mubr.bf16.mxu0 0
    %474 = vmatmul.mubr.bf16.gmra.mrb[0].mxu0 %v393
    %v475 = vpop.f32.mrb[0].mxu0
    %v476 = vadd.f32 0.0, %v475
    %v477 = vpop.f32.mrb[0].mxu0
    %v478 = vpop.f32.mrb[0].mxu0
    %v479 = vadd.f32 0.0, %v478
    %v480 = vpop.f32.mrb[0].mxu0
    %481 = vmatprep.mubr.bf16.mxu0 0
    %482 = vmatmul.mubr.bf16.gmra.mrb[0].mxu0 %v396
    %v483 = vpop.f32.mrb[0].mxu0
    %v484 = vadd.f32 0.0, %v483
    %v485 = vpop.f32.mrb[0].mxu0
    %v486 = vpop.f32.mrb[0].mxu0
    %v487 = vadd.f32 0.0, %v486
    %v488 = vpop.f32.mrb[0].mxu0
    %489 = vmatprep.mubr.bf16.mxu0 0
    %490 = vmatmul.mubr.bf16.gmra.mrb[0].mxu0 %v399
    %v491 = vpop.f32.mrb[0].mxu0
    %v492 = vadd.f32 0.0, %v491
    %v493 = vpop.f32.mrb[0].mxu0
    %v494 = vpop.f32.mrb[0].mxu0
    %v495 = vadd.f32 0.0, %v494
    %v496 = vpop.f32.mrb[0].mxu0
    %497 = vdwg.mxu0
    %v498 = vmax.f32 %v436, %v452
    %v499 = vmax.f32 %v439, %v455
    %v500 = vmax.f32 %v444, %v460
    %v501 = vmax.f32 %v447, %v463
    %v502 = vmax.f32 %v498, %v468
    %v503 = vmax.f32 %v499, %v471
    %v504 = vmax.f32 %v500, %v476
    %v505 = vmax.f32 %v501, %v479
    %v506 = vmax.f32 %v502, %v484
    %v507 = vmax.f32 %v503, %v487
    %v508 = vmax.f32 %v504, %v492
    %v509 = vmax.f32 %v505, %v495
    %v510 = vmax.f32 %v506, %v507
    %v511 = vmax.f32 %v508, %v509
    %v512 = vmax.f32 %v510, %v511
    %v513 = vrot.slane %v512, 4
    %v514 = vmax.f32 %v512, %v513
    %v515 = vrot.slane %v514, 2
    %v516 = vmax.f32 %v514, %v515
    %v517 = vrot.slane %v516, 1
    %v518 = vmax.f32 %v516, %v517
    %s519 = sadd.s32 1, 2
    %s520 = smul.addr %s519, 4
    %s521 = scalar_lea.vmem %s0, %s520
    %v522 = vld [vmem:[%s521] sm:$0x7]
    %v523 = vpack.c.bf16 %v522, %v522
    %524 = vxpose.xlu0.c.b16.start [1/8] %v523, 128
    %525 = vxpose.xlu0.c.b16.cont [2/8] 0, 128
    %526 = vxpose.xlu0.c.b16.cont [3/8] 0, 128
    %527 = vxpose.xlu0.c.b16.cont [4/8] 0, 128
    %528 = vxpose.xlu0.c.b16.cont [5/8] 0, 128
    %529 = vxpose.xlu0.c.b16.cont [6/8] 0, 128
    %530 = vxpose.xlu0.c.b16.cont [7/8] 0, 128
    %531 = vxpose.xlu0.c.b16.end [8/8] 0, 128
    %v532 = vpop.trf.xlu0
    %v533 = vpop.trf.xlu0
    %v534 = vpop.trf.xlu0
    %v535 = vpop.trf.xlu0
    %v536 = vpop.trf.xlu0
    %v537 = vpop.trf.xlu0
    %v538 = vpop.trf.xlu0
    %v539 = vpop.trf.xlu0
    %v541 = vsel %vm44, %v532, 0
    %v544 = vsel %vm44, %v533, 0
    %v547 = vsel %vm44, %v534, 0
    %v550 = vsel %vm44, %v535, 0
    %v553 = vsel %vm44, %v536, 0
    %v556 = vsel %vm44, %v537, 0
    %v559 = vsel %vm44, %v538, 0
    %v562 = vsel %vm44, %v539, 0
    %564 = vmatprep.subr.bf16.mxu0 0
    %565 = vmatpush1.bf16.msra.mxu0 %v74
    %566 = vmatprep.subr.bf16.mxu0 0
    %567 = vmatpush1.bf16.msra.mxu0 0
    %568 = vmatprep.subr.bf16.mxu0 0
    %569 = vmatpush1.bf16.msra.mxu0 0
    %570 = vmatprep.subr.bf16.mxu0 0
    %571 = vmatpush1.bf16.msra.mxu0 0
    %572 = vmatprep.subr.bf16.mxu0 0
    %573 = vmatpush1.bf16.msra.mxu0 0
    %574 = vmatprep.subr.bf16.mxu0 0
    %575 = vmatpush1.bf16.msra.mxu0 0
    %576 = vmatprep.subr.bf16.mxu0 0
    %577 = vmatpush1.bf16.msra.mxu0 0
    %578 = vmatprep.subr.bf16.mxu0 0
    %579 = vmatpush1.bf16.msra.mxu0 0
    %580 = vmatprep.subr.bf16.mxu0 0
    %581 = vmatpush1.bf16.msra.mxu0 0
    %582 = vmatprep.subr.bf16.mxu0 0
    %583 = vmatpush1.bf16.msra.mxu0 0
    %584 = vmatprep.subr.bf16.mxu0 0
    %585 = vmatpush1.bf16.msra.mxu0 0
    %586 = vmatprep.subr.bf16.mxu0 0
    %587 = vmatpush1.bf16.msra.mxu0 0
    %588 = vmatprep.subr.bf16.mxu0 0
    %589 = vmatpush1.bf16.msra.mxu0 0
    %590 = vmatprep.subr.bf16.mxu0 0
    %591 = vmatpush1.bf16.msra.mxu0 0
    %592 = vmatprep.subr.bf16.mxu0 0
    %593 = vmatpush1.bf16.msra.mxu0 0
    %594 = vmatprep.subr.bf16.mxu0 0
    %595 = vmatpush1.bf16.msra.mxu0 0
    %596 = vmatprep.mubr.bf16.mxu0 0
    %597 = vmatmul.mubr.bf16.gmra.mrb[0].mxu0 %v541
    %v598 = vpop.f32.mrb[0].mxu0
    %v599 = vadd.f32 0.0, %v598
    %v600 = vpop.f32.mrb[0].mxu0
    %v601 = vpop.f32.mrb[0].mxu0
    %v602 = vadd.f32 0.0, %v601
    %v603 = vpop.f32.mrb[0].mxu0
    %604 = vmatprep.mubr.bf16.mxu0 0
    %605 = vmatmul.mubr.bf16.gmra.mrb[0].mxu0 %v544
    %v606 = vpop.f32.mrb[0].mxu0
    %v607 = vadd.f32 0.0, %v606
    %v608 = vpop.f32.mrb[0].mxu0
    %v609 = vpop.f32.mrb[0].mxu0
    %v610 = vadd.f32 0.0, %v609
    %v611 = vpop.f32.mrb[0].mxu0
    %612 = vmatprep.mubr.bf16.mxu0 0
    %613 = vmatmul.mubr.bf16.gmra.mrb[0].mxu0 %v547
    %v614 = vpop.f32.mrb[0].mxu0
    %v615 = vadd.f32 0.0, %v614
    %v616 = vpop.f32.mrb[0].mxu0
    %v617 = vpop.f32.mrb[0].mxu0
    %v618 = vadd.f32 0.0, %v617
    %v619 = vpop.f32.mrb[0].mxu0
    %620 = vmatprep.mubr.bf16.mxu0 0
    %621 = vmatmul.mubr.bf16.gmra.mrb[0].mxu0 %v550
    %v622 = vpop.f32.mrb[0].mxu0
    %v623 = vadd.f32 0.0, %v622
    %v624 = vpop.f32.mrb[0].mxu0
    %v625 = vpop.f32.mrb[0].mxu0
    %v626 = vadd.f32 0.0, %v625
    %v627 = vpop.f32.mrb[0].mxu0
    %628 = vmatprep.mubr.bf16.mxu0 0
    %629 = vmatmul.mubr.bf16.gmra.mrb[0].mxu0 %v553
    %v630 = vpop.f32.mrb[0].mxu0
    %v631 = vadd.f32 0.0, %v630
    %v632 = vpop.f32.mrb[0].mxu0
    %v633 = vpop.f32.mrb[0].mxu0
    %v634 = vadd.f32 0.0, %v633
    %v635 = vpop.f32.mrb[0].mxu0
    %636 = vmatprep.mubr.bf16.mxu0 0
    %637 = vmatmul.mubr.bf16.gmra.mrb[0].mxu0 %v556
    %v638 = vpop.f32.mrb[0].mxu0
    %v639 = vadd.f32 0.0, %v638
    %v640 = vpop.f32.mrb[0].mxu0
    %v641 = vpop.f32.mrb[0].mxu0
    %v642 = vadd.f32 0.0, %v641
    %v643 = vpop.f32.mrb[0].mxu0
    %644 = vmatprep.mubr.bf16.mxu0 0
    %645 = vmatmul.mubr.bf16.gmra.mrb[0].mxu0 %v559
    %v646 = vpop.f32.mrb[0].mxu0
    %v647 = vadd.f32 0.0, %v646
    %v648 = vpop.f32.mrb[0].mxu0
    %v649 = vpop.f32.mrb[0].mxu0
    %v650 = vadd.f32 0.0, %v649
    %v651 = vpop.f32.mrb[0].mxu0
    %652 = vmatprep.mubr.bf16.mxu0 0
    %653 = vmatmul.mubr.bf16.gmra.mrb[0].mxu0 %v562
    %v654 = vpop.f32.mrb[0].mxu0
    %v655 = vadd.f32 0.0, %v654
    %v656 = vpop.f32.mrb[0].mxu0
    %v657 = vpop.f32.mrb[0].mxu0
    %v658 = vadd.f32 0.0, %v657
    %v659 = vpop.f32.mrb[0].mxu0
    %660 = vdwg.mxu0
    %v661 = vmax.f32 %v599, %v615
    %v662 = vmax.f32 %v602, %v618
    %v663 = vmax.f32 %v607, %v623
    %v664 = vmax.f32 %v610, %v626
    %v665 = vmax.f32 %v661, %v631
    %v666 = vmax.f32 %v662, %v634
    %v667 = vmax.f32 %v663, %v639
    %v668 = vmax.f32 %v664, %v642
    %v669 = vmax.f32 %v665, %v647
    %v670 = vmax.f32 %v666, %v650
    %v671 = vmax.f32 %v667, %v655
    %v672 = vmax.f32 %v668, %v658
    %v673 = vmax.f32 %v669, %v670
    %v674 = vmax.f32 %v671, %v672
    %v675 = vmax.f32 %v673, %v674
    %v676 = vrot.slane %v675, 4
    %v677 = vmax.f32 %v675, %v676
    %v678 = vrot.slane %v677, 2
    %v679 = vmax.f32 %v677, %v678
    %v680 = vrot.slane %v679, 1
    %v681 = vmax.f32 %v679, %v680
    %v682 = vmax.f32 %v518, %v681
    %v683 = vsel %vm69, %v355, %v682
    %v684 = vld [vmem:[%s2] sm:$0xf]
    %v685 = vld [vmem:[%s2 + $0x4] sm:$0xf]
    %v686 = vld [vmem:[%s2 + $0x8] sm:$0xf]
    %v687 = vld [vmem:[%s2 + $0xc] sm:$0xf]
    %v688 = vld [vmem:[%s2 + $0x10] sm:$0xf]
    %v689 = vld [vmem:[%s2 + $0x14] sm:$0xf]
    %v690 = vld [vmem:[%s2 + $0x18] sm:$0xf]
    %v691 = vld [vmem:[%s2 + $0x1c] sm:$0xf]
    %v692 = vld [vmem:[%s2 + $0x20] sm:$0xf]
    %v693 = vld [vmem:[%s2 + $0x24] sm:$0xf]
    %v694 = vld [vmem:[%s2 + $0x28] sm:$0xf]
    %v695 = vld [vmem:[%s2 + $0x2c] sm:$0xf]
    %v696 = vld [vmem:[%s2 + $0x30] sm:$0xf]
    %v697 = vld [vmem:[%s2 + $0x34] sm:$0xf]
    %v698 = vld [vmem:[%s2 + $0x38] sm:$0xf]
    %v699 = vld [vmem:[%s2 + $0x3c] sm:$0xf]
    %v700 = vld [vmem:[%s4] sm:$0xf]
    %v701 = vld [vmem:[%s4 + $0x4] sm:$0xf]
    %v702 = vld [vmem:[%s4 + $0x8] sm:$0xf]
    %v703 = vld [vmem:[%s4 + $0xc] sm:$0xf]
    %v720 = vunpack.c.l.b16 %v684
    %v721 = vunpack.c.l.b16 %v685
    %v722 = vunpack.c.l.b16 %v686
    %v723 = vunpack.c.l.b16 %v687
    %v724 = vunpack.c.l.b16 %v688
    %v725 = vunpack.c.l.b16 %v689
    %v726 = vunpack.c.l.b16 %v690
    %v727 = vunpack.c.l.b16 %v691
    %v728 = vunpack.c.l.b16 %v692
    %v729 = vunpack.c.l.b16 %v693
    %v730 = vunpack.c.l.b16 %v694
    %v731 = vunpack.c.l.b16 %v695
    %v732 = vunpack.c.l.b16 %v696
    %v733 = vunpack.c.l.b16 %v697
    %v734 = vunpack.c.l.b16 %v698
    %v735 = vunpack.c.l.b16 %v699
    %v736 = vpack.c.b16 %v721, %v720
    %v737 = vpack.c.b16 %v723, %v722
    %v738 = vpack.c.b16 %v725, %v724
    %v739 = vpack.c.b16 %v727, %v726
    %v740 = vpack.c.b16 %v729, %v728
    %v741 = vpack.c.b16 %v731, %v730
    %v742 = vpack.c.b16 %v733, %v732
    %v743 = vpack.c.b16 %v735, %v734
    %v748 = vunpack.c.l.b16 %v700
    %v749 = vunpack.c.l.b16 %v701
    %v750 = vunpack.c.l.b16 %v702
    %v751 = vunpack.c.l.b16 %v703
    %v752 = vpack.c.b16 %v749, %v748
    %v753 = vpack.c.b16 %v751, %v750
    %vm756 = vcmask 261120
    %v758 = vsel %vm756, %v736, 0
    %v761 = vsel %vm756, %v737, 0
    %v764 = vsel %vm756, %v738, 0
    %v767 = vsel %vm756, %v739, 0
    %v770 = vsel %vm756, %v740, 0
    %v773 = vsel %vm756, %v741, 0
    %v776 = vsel %vm756, %v742, 0
    %v779 = vsel %vm756, %v743, 0
    %781 = vmatprep.subr.bf16.mxu0 0
    %782 = vmatpush1.bf16.msra.mxu0 %v752
    %783 = vmatprep.subr.bf16.mxu0 0
    %784 = vmatpush1.bf16.msra.mxu0 %v753
    %785 = vmatprep.subr.bf16.mxu0 0
    %786 = vmatpush1.bf16.msra.mxu0 0
    %787 = vmatprep.subr.bf16.mxu0 0
    %788 = vmatpush1.bf16.msra.mxu0 0
    %789 = vmatprep.subr.bf16.mxu0 0
    %790 = vmatpush1.bf16.msra.mxu0 0
    %791 = vmatprep.subr.bf16.mxu0 0
    %792 = vmatpush1.bf16.msra.mxu0 0
    %793 = vmatprep.subr.bf16.mxu0 0
    %794 = vmatpush1.bf16.msra.mxu0 0
    %795 = vmatprep.subr.bf16.mxu0 0
    %796 = vmatpush1.bf16.msra.mxu0 0
    %797 = vmatprep.subr.bf16.mxu0 0
    %798 = vmatpush1.bf16.msra.mxu0 0
    %799 = vmatprep.subr.bf16.mxu0 0
    %800 = vmatpush1.bf16.msra.mxu0 0
    %801 = vmatprep.subr.bf16.mxu0 0
    %802 = vmatpush1.bf16.msra.mxu0 0
    %803 = vmatprep.subr.bf16.mxu0 0
    %804 = vmatpush1.bf16.msra.mxu0 0
    %805 = vmatprep.subr.bf16.mxu0 0
    %806 = vmatpush1.bf16.msra.mxu0 0
    %807 = vmatprep.subr.bf16.mxu0 0
    %808 = vmatpush1.bf16.msra.mxu0 0
    %809 = vmatprep.subr.bf16.mxu0 0
    %810 = vmatpush1.bf16.msra.mxu0 0
    %811 = vmatprep.subr.bf16.mxu0 0
    %812 = vmatpush1.bf16.msra.mxu0 0
    %813 = vmatprep.mubr.bf16.mxu0 0
    %814 = vmatmul.mubr.bf16.gmra.mrb[0].mxu0 %v758
    %v815 = vpop.f32.mrb[0].mxu0
    %v816 = vadd.f32 0.0, %v815
    %v817 = vpop.f32.mrb[0].mxu0
    %v818 = vpop.f32.mrb[0].mxu0
    %v819 = vadd.f32 0.0, %v818
    %v820 = vpop.f32.mrb[0].mxu0
    %821 = vmatprep.mubr.bf16.mxu0 0
    %822 = vmatmul.mubr.bf16.gmra.mrb[0].mxu0 %v761
    %v823 = vpop.f32.mrb[0].mxu0
    %v824 = vadd.f32 0.0, %v823
    %v825 = vpop.f32.mrb[0].mxu0
    %v826 = vpop.f32.mrb[0].mxu0
    %v827 = vadd.f32 0.0, %v826
    %v828 = vpop.f32.mrb[0].mxu0
    %829 = vmatprep.mubr.bf16.mxu0 0
    %830 = vmatmul.mubr.bf16.gmra.mrb[0].mxu0 %v764
    %v831 = vpop.f32.mrb[0].mxu0
    %v832 = vadd.f32 0.0, %v831
    %v833 = vpop.f32.mrb[0].mxu0
    %v834 = vpop.f32.mrb[0].mxu0
    %v835 = vadd.f32 0.0, %v834
    %v836 = vpop.f32.mrb[0].mxu0
    %837 = vmatprep.mubr.bf16.mxu0 0
    %838 = vmatmul.mubr.bf16.gmra.mrb[0].mxu0 %v767
    %v839 = vpop.f32.mrb[0].mxu0
    %v840 = vadd.f32 0.0, %v839
    %v841 = vpop.f32.mrb[0].mxu0
    %v842 = vpop.f32.mrb[0].mxu0
    %v843 = vadd.f32 0.0, %v842
    %v844 = vpop.f32.mrb[0].mxu0
    %845 = vmatprep.mubr.bf16.mxu0 0
    %846 = vmatmul.mubr.bf16.gmra.mrb[0].mxu0 %v770
    %v847 = vpop.f32.mrb[0].mxu0
    %v848 = vadd.f32 0.0, %v847
    %v849 = vpop.f32.mrb[0].mxu0
    %v850 = vpop.f32.mrb[0].mxu0
    %v851 = vadd.f32 0.0, %v850
    %v852 = vpop.f32.mrb[0].mxu0
    %853 = vmatprep.mubr.bf16.mxu0 0
    %854 = vmatmul.mubr.bf16.gmra.mrb[0].mxu0 %v773
    %v855 = vpop.f32.mrb[0].mxu0
    %v856 = vadd.f32 0.0, %v855
    %v857 = vpop.f32.mrb[0].mxu0
    %v858 = vpop.f32.mrb[0].mxu0
    %v859 = vadd.f32 0.0, %v858
    %v860 = vpop.f32.mrb[0].mxu0
    %861 = vmatprep.mubr.bf16.mxu0 0
    %862 = vmatmul.mubr.bf16.gmra.mrb[0].mxu0 %v776
    %v863 = vpop.f32.mrb[0].mxu0
    %v864 = vadd.f32 0.0, %v863
    %v865 = vpop.f32.mrb[0].mxu0
    %v866 = vpop.f32.mrb[0].mxu0
    %v867 = vadd.f32 0.0, %v866
    %v868 = vpop.f32.mrb[0].mxu0
    %869 = vmatprep.mubr.bf16.mxu0 0
    %870 = vmatmul.mubr.bf16.gmra.mrb[0].mxu0 %v779
    %v871 = vpop.f32.mrb[0].mxu0
    %v872 = vadd.f32 0.0, %v871
    %v873 = vpop.f32.mrb[0].mxu0
    %v874 = vpop.f32.mrb[0].mxu0
    %v875 = vadd.f32 0.0, %v874
    %v876 = vpop.f32.mrb[0].mxu0
    %877 = vdwg.mxu0
    %v878 = vld [vmem:[%s3] sm:$0xf]
    %v879 = vld [vmem:[%s3 + $0x4] sm:$0xf]
    %v880 = vld [vmem:[%s3 + $0x8] sm:$0xf]
    %v881 = vld [vmem:[%s3 + $0xc] sm:$0xf]
    %v882 = vld [vmem:[%s3 + $0x10] sm:$0xf]
    %v883 = vld [vmem:[%s3 + $0x14] sm:$0xf]
    %v884 = vld [vmem:[%s3 + $0x18] sm:$0xf]
    %v885 = vld [vmem:[%s3 + $0x1c] sm:$0xf]
    %v886 = vld [vmem:[%s3 + $0x20] sm:$0xf]
    %v887 = vld [vmem:[%s3 + $0x24] sm:$0xf]
    %v888 = vld [vmem:[%s3 + $0x28] sm:$0xf]
    %v889 = vld [vmem:[%s3 + $0x2c] sm:$0xf]
    %v890 = vld [vmem:[%s3 + $0x30] sm:$0xf]
    %v891 = vld [vmem:[%s3 + $0x34] sm:$0xf]
    %v892 = vld [vmem:[%s3 + $0x38] sm:$0xf]
    %v893 = vld [vmem:[%s3 + $0x3c] sm:$0xf]
    %v894 = vpack.c.bf16 %v819, %v816
    %v895 = vpack.c.bf16 %v827, %v824
    %v896 = vpack.c.bf16 %v835, %v832
    %v897 = vpack.c.bf16 %v843, %v840
    %v898 = vpack.c.bf16 %v851, %v848
    %v899 = vpack.c.bf16 %v859, %v856
    %v900 = vpack.c.bf16 %v867, %v864
    %v901 = vpack.c.bf16 %v875, %v872
    %v918 = vunpack.c.l.b16 %v878
    %v919 = vunpack.c.l.b16 %v879
    %v920 = vunpack.c.l.b16 %v880
    %v921 = vunpack.c.l.b16 %v881
    %v922 = vunpack.c.l.b16 %v882
    %v923 = vunpack.c.l.b16 %v883
    %v924 = vunpack.c.l.b16 %v884
    %v925 = vunpack.c.l.b16 %v885
    %v926 = vunpack.c.l.b16 %v886
    %v927 = vunpack.c.l.b16 %v887
    %v928 = vunpack.c.l.b16 %v888
    %v929 = vunpack.c.l.b16 %v889
    %v930 = vunpack.c.l.b16 %v890
    %v931 = vunpack.c.l.b16 %v891
    %v932 = vunpack.c.l.b16 %v892
    %v933 = vunpack.c.l.b16 %v893
    %v934 = vpack.c.b16 %v919, %v918
    %v935 = vpack.c.b16 %v921, %v920
    %v936 = vpack.c.b16 %v923, %v922
    %v937 = vpack.c.b16 %v925, %v924
    %v938 = vpack.c.b16 %v927, %v926
    %v939 = vpack.c.b16 %v929, %v928
    %v940 = vpack.c.b16 %v931, %v930
    %v941 = vpack.c.b16 %v933, %v932
    %950 = vmatprep.subr.bf16.mxu0 0
    %951 = vmatpush1.bf16.msra.mxu0 %v894
    %952 = vmatprep.subr.bf16.mxu0 0
    %953 = vmatpush1.bf16.msra.mxu0 %v895
    %954 = vmatprep.subr.bf16.mxu0 0
    %955 = vmatpush1.bf16.msra.mxu0 %v896
    %956 = vmatprep.subr.bf16.mxu0 0
    %957 = vmatpush1.bf16.msra.mxu0 %v897
    %958 = vmatprep.subr.bf16.mxu0 0
    %959 = vmatpush1.bf16.msra.mxu0 %v898
    %960 = vmatprep.subr.bf16.mxu0 0
    %961 = vmatpush1.bf16.msra.mxu0 %v899
    %962 = vmatprep.subr.bf16.mxu0 0
    %963 = vmatpush1.bf16.msra.mxu0 %v900
    %964 = vmatprep.subr.bf16.mxu0 0
    %965 = vmatpush1.bf16.msra.mxu0 %v901
    %966 = vmatprep.subr.bf16.mxu0 0
    %967 = vmatpush1.bf16.msra.mxu0 0
    %968 = vmatprep.subr.bf16.mxu0 0
    %969 = vmatpush1.bf16.msra.mxu0 0
    %970 = vmatprep.subr.bf16.mxu0 0
    %971 = vmatpush1.bf16.msra.mxu0 0
    %972 = vmatprep.subr.bf16.mxu0 0
    %973 = vmatpush1.bf16.msra.mxu0 0
    %974 = vmatprep.subr.bf16.mxu0 0
    %975 = vmatpush1.bf16.msra.mxu0 0
    %976 = vmatprep.subr.bf16.mxu0 0
    %977 = vmatpush1.bf16.msra.mxu0 0
    %978 = vmatprep.subr.bf16.mxu0 0
    %979 = vmatpush1.bf16.msra.mxu0 0
    %980 = vmatprep.subr.bf16.mxu0 0
    %981 = vmatpush1.bf16.msra.mxu0 0
    %982 = vmatprep.mubr.bf16.mxu0 0
    %983 = vmatmul.mubr.bf16.gmra.mrb[0].mxu0 %v934
    %v984 = vpop.f32.mrb[0].mxu0
    %v985 = vadd.f32 0.0, %v984
    %v986 = vpop.f32.mrb[0].mxu0
    %v987 = vpop.f32.mrb[0].mxu0
    %v988 = vadd.f32 0.0, %v987
    %v989 = vpop.f32.mrb[0].mxu0
    %990 = vmatprep.mubr.bf16.mxu0 0
    %991 = vmatmul.mubr.bf16.gmra.mrb[0].mxu0 %v935
    %v992 = vpop.f32.mrb[0].mxu0
    %v993 = vadd.f32 0.0, %v992
    %v994 = vpop.f32.mrb[0].mxu0
    %v995 = vpop.f32.mrb[0].mxu0
    %v996 = vadd.f32 0.0, %v995
    %v997 = vpop.f32.mrb[0].mxu0
    %998 = vmatprep.mubr.bf16.mxu0 0
    %999 = vmatmul.mubr.bf16.gmra.mrb[0].mxu0 %v936
    %v1000 = vpop.f32.mrb[0].mxu0
    %v1001 = vadd.f32 0.0, %v1000
    %v1002 = vpop.f32.mrb[0].mxu0
    %v1003 = vpop.f32.mrb[0].mxu0
    %v1004 = vadd.f32 0.0, %v1003
    %v1005 = vpop.f32.mrb[0].mxu0
    %1006 = vmatprep.mubr.bf16.mxu0 0
    %1007 = vmatmul.mubr.bf16.gmra.mrb[0].mxu0 %v937
    %v1008 = vpop.f32.mrb[0].mxu0
    %v1009 = vadd.f32 0.0, %v1008
    %v1010 = vpop.f32.mrb[0].mxu0
    %v1011 = vpop.f32.mrb[0].mxu0
    %v1012 = vadd.f32 0.0, %v1011
    %v1013 = vpop.f32.mrb[0].mxu0
    %1014 = vmatprep.mubr.bf16.mxu0 0
    %1015 = vmatmul.mubr.bf16.gmra.mrb[0].mxu0 %v938
    %v1016 = vpop.f32.mrb[0].mxu0
    %v1017 = vadd.f32 0.0, %v1016
    %v1018 = vpop.f32.mrb[0].mxu0
    %v1019 = vpop.f32.mrb[0].mxu0
    %v1020 = vadd.f32 0.0, %v1019
    %v1021 = vpop.f32.mrb[0].mxu0
    %1022 = vmatprep.mubr.bf16.mxu0 0
    %1023 = vmatmul.mubr.bf16.gmra.mrb[0].mxu0 %v939
    %v1024 = vpop.f32.mrb[0].mxu0
    %v1025 = vadd.f32 0.0, %v1024
    %v1026 = vpop.f32.mrb[0].mxu0
    %v1027 = vpop.f32.mrb[0].mxu0
    %v1028 = vadd.f32 0.0, %v1027
    %v1029 = vpop.f32.mrb[0].mxu0
    %1030 = vmatprep.mubr.bf16.mxu0 0
    %1031 = vmatmul.mubr.bf16.gmra.mrb[0].mxu0 %v940
    %v1032 = vpop.f32.mrb[0].mxu0
    %v1033 = vadd.f32 0.0, %v1032
    %v1034 = vpop.f32.mrb[0].mxu0
    %v1035 = vpop.f32.mrb[0].mxu0
    %v1036 = vadd.f32 0.0, %v1035
    %v1037 = vpop.f32.mrb[0].mxu0
    %1038 = vmatprep.mubr.bf16.mxu0 0
    %1039 = vmatmul.mubr.bf16.gmra.mrb[0].mxu0 %v941
    %v1040 = vpop.f32.mrb[0].mxu0
    %v1041 = vadd.f32 0.0, %v1040
    %v1042 = vpop.f32.mrb[0].mxu0
    %v1043 = vpop.f32.mrb[0].mxu0
    %v1044 = vadd.f32 0.0, %v1043
    %v1045 = vpop.f32.mrb[0].mxu0
    %1046 = vdwg.mxu0
    %vm1047 = vcmp.ge.f32.partialorder %v985, 0.0
    %vm1048 = vcmp.ge.f32.partialorder %v988, 0.0
    %vm1049 = vcmp.ge.f32.partialorder %v993, 0.0
    %vm1050 = vcmp.ge.f32.partialorder %v996, 0.0
    %vm1051 = vcmp.ge.f32.partialorder %v1001, 0.0
    %vm1052 = vcmp.ge.f32.partialorder %v1004, 0.0
    %vm1053 = vcmp.ge.f32.partialorder %v1009, 0.0
    %vm1054 = vcmp.ge.f32.partialorder %v1012, 0.0
    %vm1055 = vcmp.ge.f32.partialorder %v1017, 0.0
    %vm1056 = vcmp.ge.f32.partialorder %v1020, 0.0
    %vm1057 = vcmp.ge.f32.partialorder %v1025, 0.0
    %vm1058 = vcmp.ge.f32.partialorder %v1028, 0.0
    %vm1059 = vcmp.ge.f32.partialorder %v1033, 0.0
    %vm1060 = vcmp.ge.f32.partialorder %v1036, 0.0
    %vm1061 = vcmp.ge.f32.partialorder %v1041, 0.0
    %vm1062 = vcmp.ge.f32.partialorder %v1044, 0.0
    %v1063 = vmul.f32 %v985, 0.2
    %v1064 = vmul.f32 %v988, 0.2
    %v1065 = vmul.f32 %v993, 0.2
    %v1066 = vmul.f32 %v996, 0.2
    %v1067 = vmul.f32 %v1001, 0.2
    %v1068 = vmul.f32 %v1004, 0.2
    %v1069 = vmul.f32 %v1009, 0.2
    %v1070 = vmul.f32 %v1012, 0.2
    %v1071 = vmul.f32 %v1017, 0.2
    %v1072 = vmul.f32 %v1020, 0.2
    %v1073 = vmul.f32 %v1025, 0.2
    %v1074 = vmul.f32 %v1028, 0.2
    %v1075 = vmul.f32 %v1033, 0.2
    %v1076 = vmul.f32 %v1036, 0.2
    %v1077 = vmul.f32 %v1041, 0.2
    %v1078 = vmul.f32 %v1044, 0.2
    %v1079 = vsel %vm1047, %v985, %v1063
    %v1080 = vsel %vm1048, %v988, %v1064
    %v1081 = vsel %vm1049, %v993, %v1065
    %v1082 = vsel %vm1050, %v996, %v1066
    %v1083 = vsel %vm1051, %v1001, %v1067
    %v1084 = vsel %vm1052, %v1004, %v1068
    %v1085 = vsel %vm1053, %v1009, %v1069
    %v1086 = vsel %vm1054, %v1012, %v1070
    %v1087 = vsel %vm1055, %v1017, %v1071
    %v1088 = vsel %vm1056, %v1020, %v1072
    %v1089 = vsel %vm1057, %v1025, %v1073
    %v1090 = vsel %vm1058, %v1028, %v1074
    %v1091 = vsel %vm1059, %v1033, %v1075
    %v1092 = vsel %vm1060, %v1036, %v1076
    %v1093 = vsel %vm1061, %v1041, %v1077
    %v1094 = vsel %vm1062, %v1044, %v1078
    %v1095 = vpack.c.bf16 %v1080, %v1079
    %v1096 = vpack.c.bf16 %v1082, %v1081
    %v1097 = vpack.c.bf16 %v1084, %v1083
    %v1098 = vpack.c.bf16 %v1086, %v1085
    %v1099 = vpack.c.bf16 %v1088, %v1087
    %v1100 = vpack.c.bf16 %v1090, %v1089
    %v1101 = vpack.c.bf16 %v1092, %v1091
    %v1102 = vpack.c.bf16 %v1094, %v1093
    %v1103 = vld [vmem:[%s5] sm:$0xf]
    %v1104 = vld [vmem:[%s5 + $0x4] sm:$0xf]
    %v1105 = vld [vmem:[%s5 + $0x8] sm:$0xf]
    %v1106 = vld [vmem:[%s5 + $0xc] sm:$0xf]
    %v1107 = vld [vmem:[%s5 + $0x10] sm:$0xf]
    %v1108 = vld [vmem:[%s5 + $0x14] sm:$0xf]
    %v1109 = vld [vmem:[%s5 + $0x18] sm:$0xf]
    %v1110 = vld [vmem:[%s5 + $0x1c] sm:$0xf]
    %v1119 = vunpack.c.l.b16 %v1103
    %v1120 = vunpack.c.l.b16 %v1104
    %v1121 = vunpack.c.l.b16 %v1105
    %v1122 = vunpack.c.l.b16 %v1106
    %v1123 = vunpack.c.l.b16 %v1107
    %v1124 = vunpack.c.l.b16 %v1108
    %v1125 = vunpack.c.l.b16 %v1109
    %v1126 = vunpack.c.l.b16 %v1110
    %v1127 = vpack.c.b16 %v1120, %v1119
    %v1128 = vpack.c.b16 %v1122, %v1121
    %v1129 = vpack.c.b16 %v1124, %v1123
    %v1130 = vpack.c.b16 %v1126, %v1125
    %vm1135 = vcmask 523264
    %v1137 = vsel %vm1135, %v1095, 0
    %v1140 = vsel %vm1135, %v1096, 0
    %v1143 = vsel %vm1135, %v1097, 0
    %v1146 = vsel %vm1135, %v1098, 0
    %v1149 = vsel %vm1135, %v1099, 0
    %v1152 = vsel %vm1135, %v1100, 0
    %v1155 = vsel %vm1135, %v1101, 0
    %v1158 = vsel %vm1135, %v1102, 0
    %1160 = vmatprep.subr.bf16.mxu0 0
    %1161 = vmatpush1.bf16.msra.mxu0 %v1127
    %1162 = vmatprep.subr.bf16.mxu0 0
    %1163 = vmatpush1.bf16.msra.mxu0 %v1128
    %1164 = vmatprep.subr.bf16.mxu0 0
    %1165 = vmatpush1.bf16.msra.mxu0 %v1129
    %1166 = vmatprep.subr.bf16.mxu0 0
    %1167 = vmatpush1.bf16.msra.mxu0 %v1130
    %1168 = vmatprep.subr.bf16.mxu0 0
    %1169 = vmatpush1.bf16.msra.mxu0 0
    %1170 = vmatprep.subr.bf16.mxu0 0
    %1171 = vmatpush1.bf16.msra.mxu0 0
    %1172 = vmatprep.subr.bf16.mxu0 0
    %1173 = vmatpush1.bf16.msra.mxu0 0
    %1174 = vmatprep.subr.bf16.mxu0 0
    %1175 = vmatpush1.bf16.msra.mxu0 0
    %1176 = vmatprep.subr.bf16.mxu0 0
    %1177 = vmatpush1.bf16.msra.mxu0 0
    %1178 = vmatprep.subr.bf16.mxu0 0
    %1179 = vmatpush1.bf16.msra.mxu0 0
    %1180 = vmatprep.subr.bf16.mxu0 0
    %1181 = vmatpush1.bf16.msra.mxu0 0
    %1182 = vmatprep.subr.bf16.mxu0 0
    %1183 = vmatpush1.bf16.msra.mxu0 0
    %1184 = vmatprep.subr.bf16.mxu0 0
    %1185 = vmatpush1.bf16.msra.mxu0 0
    %1186 = vmatprep.subr.bf16.mxu0 0
    %1187 = vmatpush1.bf16.msra.mxu0 0
    %1188 = vmatprep.subr.bf16.mxu0 0
    %1189 = vmatpush1.bf16.msra.mxu0 0
    %1190 = vmatprep.subr.bf16.mxu0 0
    %1191 = vmatpush1.bf16.msra.mxu0 0
    %1192 = vmatprep.mubr.bf16.mxu0 0
    %1193 = vmatmul.mubr.bf16.gmra.mrb[0].mxu0 %v1137
    %v1194 = vpop.f32.mrb[0].mxu0
    %v1195 = vadd.f32 0.0, %v1194
    %v1196 = vpop.f32.mrb[0].mxu0
    %v1197 = vpop.f32.mrb[0].mxu0
    %v1198 = vadd.f32 0.0, %v1197
    %v1199 = vpop.f32.mrb[0].mxu0
    %1200 = vmatprep.mubr.bf16.mxu0 0
    %1201 = vmatmul.mubr.bf16.gmra.mrb[0].mxu0 %v1140
    %v1202 = vpop.f32.mrb[0].mxu0
    %v1203 = vadd.f32 0.0, %v1202
    %v1204 = vpop.f32.mrb[0].mxu0
    %v1205 = vpop.f32.mrb[0].mxu0
    %v1206 = vadd.f32 0.0, %v1205
    %v1207 = vpop.f32.mrb[0].mxu0
    %1208 = vmatprep.mubr.bf16.mxu0 0
    %1209 = vmatmul.mubr.bf16.gmra.mrb[0].mxu0 %v1143
    %v1210 = vpop.f32.mrb[0].mxu0
    %v1211 = vadd.f32 0.0, %v1210
    %v1212 = vpop.f32.mrb[0].mxu0
    %v1213 = vpop.f32.mrb[0].mxu0
    %v1214 = vadd.f32 0.0, %v1213
    %v1215 = vpop.f32.mrb[0].mxu0
    %1216 = vmatprep.mubr.bf16.mxu0 0
    %1217 = vmatmul.mubr.bf16.gmra.mrb[0].mxu0 %v1146
    %v1218 = vpop.f32.mrb[0].mxu0
    %v1219 = vadd.f32 0.0, %v1218
    %v1220 = vpop.f32.mrb[0].mxu0
    %v1221 = vpop.f32.mrb[0].mxu0
    %v1222 = vadd.f32 0.0, %v1221
    %v1223 = vpop.f32.mrb[0].mxu0
    %1224 = vmatprep.mubr.bf16.mxu0 0
    %1225 = vmatmul.mubr.bf16.gmra.mrb[0].mxu0 %v1149
    %v1226 = vpop.f32.mrb[0].mxu0
    %v1227 = vadd.f32 0.0, %v1226
    %v1228 = vpop.f32.mrb[0].mxu0
    %v1229 = vpop.f32.mrb[0].mxu0
    %v1230 = vadd.f32 0.0, %v1229
    %v1231 = vpop.f32.mrb[0].mxu0
    %1232 = vmatprep.mubr.bf16.mxu0 0
    %1233 = vmatmul.mubr.bf16.gmra.mrb[0].mxu0 %v1152
    %v1234 = vpop.f32.mrb[0].mxu0
    %v1235 = vadd.f32 0.0, %v1234
    %v1236 = vpop.f32.mrb[0].mxu0
    %v1237 = vpop.f32.mrb[0].mxu0
    %v1238 = vadd.f32 0.0, %v1237
    %v1239 = vpop.f32.mrb[0].mxu0
    %1240 = vmatprep.mubr.bf16.mxu0 0
    %1241 = vmatmul.mubr.bf16.gmra.mrb[0].mxu0 %v1155
    %v1242 = vpop.f32.mrb[0].mxu0
    %v1243 = vadd.f32 0.0, %v1242
    %v1244 = vpop.f32.mrb[0].mxu0
    %v1245 = vpop.f32.mrb[0].mxu0
    %v1246 = vadd.f32 0.0, %v1245
    %v1247 = vpop.f32.mrb[0].mxu0
    %1248 = vmatprep.mubr.bf16.mxu0 0
    %1249 = vmatmul.mubr.bf16.gmra.mrb[0].mxu0 %v1158
    %v1250 = vpop.f32.mrb[0].mxu0
    %v1251 = vadd.f32 0.0, %v1250
    %v1252 = vpop.f32.mrb[0].mxu0
    %v1253 = vpop.f32.mrb[0].mxu0
    %v1254 = vadd.f32 0.0, %v1253
    %v1255 = vpop.f32.mrb[0].mxu0
    %1256 = vdwg.mxu0
    %v1257 = vpack.c.bf16 %v1198, %v1195
    %v1258 = vpack.c.bf16 %v1206, %v1203
    %v1259 = vpack.c.bf16 %v1214, %v1211
    %v1260 = vpack.c.bf16 %v1222, %v1219
    %v1261 = vpack.c.bf16 %v1230, %v1227
    %v1262 = vpack.c.bf16 %v1238, %v1235
    %v1263 = vpack.c.bf16 %v1246, %v1243
    %v1264 = vpack.c.bf16 %v1254, %v1251
    %1265 = vmatprep.subr.bf16.mxu0 0
    %1266 = vmatpush1.bf16.msra.mxu0 %v1257
    %1267 = vmatprep.subr.bf16.mxu0 0
    %1268 = vmatpush1.bf16.msra.mxu0 %v1258
    %1269 = vmatprep.subr.bf16.mxu0 0
    %1270 = vmatpush1.bf16.msra.mxu0 %v1259
    %1271 = vmatprep.subr.bf16.mxu0 0
    %1272 = vmatpush1.bf16.msra.mxu0 %v1260
    %1273 = vmatprep.subr.bf16.mxu0 0
    %1274 = vmatpush1.bf16.msra.mxu0 %v1261
    %1275 = vmatprep.subr.bf16.mxu0 0
    %1276 = vmatpush1.bf16.msra.mxu0 %v1262
    %1277 = vmatprep.subr.bf16.mxu0 0
    %1278 = vmatpush1.bf16.msra.mxu0 %v1263
    %1279 = vmatprep.subr.bf16.mxu0 0
    %1280 = vmatpush1.bf16.msra.mxu0 %v1264
    %1281 = vmatprep.subr.bf16.mxu0 0
    %1282 = vmatpush1.bf16.msra.mxu0 0
    %1283 = vmatprep.subr.bf16.mxu0 0
    %1284 = vmatpush1.bf16.msra.mxu0 0
    %1285 = vmatprep.subr.bf16.mxu0 0
    %1286 = vmatpush1.bf16.msra.mxu0 0
    %1287 = vmatprep.subr.bf16.mxu0 0
    %1288 = vmatpush1.bf16.msra.mxu0 0
    %1289 = vmatprep.subr.bf16.mxu0 0
    %1290 = vmatpush1.bf16.msra.mxu0 0
    %1291 = vmatprep.subr.bf16.mxu0 0
    %1292 = vmatpush1.bf16.msra.mxu0 0
    %1293 = vmatprep.subr.bf16.mxu0 0
    %1294 = vmatpush1.bf16.msra.mxu0 0
    %1295 = vmatprep.subr.bf16.mxu0 0
    %1296 = vmatpush1.bf16.msra.mxu0 0
    %1297 = vmatprep.mubr.bf16.mxu0 0
    %1298 = vmatmul.mubr.bf16.gmra.mrb[0].mxu0 %v934
    %v1299 = vpop.f32.mrb[0].mxu0
    %v1300 = vadd.f32 0.0, %v1299
    %v1301 = vpop.f32.mrb[0].mxu0
    %v1302 = vpop.f32.mrb[0].mxu0
    %v1303 = vadd.f32 0.0, %v1302
    %v1304 = vpop.f32.mrb[0].mxu0
    %1305 = vmatprep.mubr.bf16.mxu0 0
    %1306 = vmatmul.mubr.bf16.gmra.mrb[0].mxu0 %v935
    %v1307 = vpop.f32.mrb[0].mxu0
    %v1308 = vadd.f32 0.0, %v1307
    %v1309 = vpop.f32.mrb[0].mxu0
    %v1310 = vpop.f32.mrb[0].mxu0
    %v1311 = vadd.f32 0.0, %v1310
    %v1312 = vpop.f32.mrb[0].mxu0
    %1313 = vmatprep.mubr.bf16.mxu0 0
    %1314 = vmatmul.mubr.bf16.gmra.mrb[0].mxu0 %v936
    %v1315 = vpop.f32.mrb[0].mxu0
    %v1316 = vadd.f32 0.0, %v1315
    %v1317 = vpop.f32.mrb[0].mxu0
    %v1318 = vpop.f32.mrb[0].mxu0
    %v1319 = vadd.f32 0.0, %v1318
    %v1320 = vpop.f32.mrb[0].mxu0
    %1321 = vmatprep.mubr.bf16.mxu0 0
    %1322 = vmatmul.mubr.bf16.gmra.mrb[0].mxu0 %v937
    %v1323 = vpop.f32.mrb[0].mxu0
    %v1324 = vadd.f32 0.0, %v1323
    %v1325 = vpop.f32.mrb[0].mxu0
    %v1326 = vpop.f32.mrb[0].mxu0
    %v1327 = vadd.f32 0.0, %v1326
    %v1328 = vpop.f32.mrb[0].mxu0
    %1329 = vmatprep.mubr.bf16.mxu0 0
    %1330 = vmatmul.mubr.bf16.gmra.mrb[0].mxu0 %v938
    %v1331 = vpop.f32.mrb[0].mxu0
    %v1332 = vadd.f32 0.0, %v1331
    %v1333 = vpop.f32.mrb[0].mxu0
    %v1334 = vpop.f32.mrb[0].mxu0
    %v1335 = vadd.f32 0.0, %v1334
    %v1336 = vpop.f32.mrb[0].mxu0
    %1337 = vmatprep.mubr.bf16.mxu0 0
    %1338 = vmatmul.mubr.bf16.gmra.mrb[0].mxu0 %v939
    %v1339 = vpop.f32.mrb[0].mxu0
    %v1340 = vadd.f32 0.0, %v1339
    %v1341 = vpop.f32.mrb[0].mxu0
    %v1342 = vpop.f32.mrb[0].mxu0
    %v1343 = vadd.f32 0.0, %v1342
    %v1344 = vpop.f32.mrb[0].mxu0
    %1345 = vmatprep.mubr.bf16.mxu0 0
    %1346 = vmatmul.mubr.bf16.gmra.mrb[0].mxu0 %v940
    %v1347 = vpop.f32.mrb[0].mxu0
    %v1348 = vadd.f32 0.0, %v1347
    %v1349 = vpop.f32.mrb[0].mxu0
    %v1350 = vpop.f32.mrb[0].mxu0
    %v1351 = vadd.f32 0.0, %v1350
    %v1352 = vpop.f32.mrb[0].mxu0
    %1353 = vmatprep.mubr.bf16.mxu0 0
    %1354 = vmatmul.mubr.bf16.gmra.mrb[0].mxu0 %v941
    %v1355 = vpop.f32.mrb[0].mxu0
    %v1356 = vadd.f32 0.0, %v1355
    %v1357 = vpop.f32.mrb[0].mxu0
    %v1358 = vpop.f32.mrb[0].mxu0
    %v1359 = vadd.f32 0.0, %v1358
    %v1360 = vpop.f32.mrb[0].mxu0
    %1361 = vdwg.mxu0
    %v1362 = vpack.c.bf16 %v683, %v683
    %v1363 = vpack.c.bf16 %v1303, %v1300
    %v1364 = vpack.c.bf16 %v1311, %v1308
    %v1365 = vpack.c.bf16 %v1319, %v1316
    %v1366 = vpack.c.bf16 %v1327, %v1324
    %v1367 = vpack.c.bf16 %v1335, %v1332
    %v1368 = vpack.c.bf16 %v1343, %v1340
    %v1369 = vpack.c.bf16 %v1351, %v1348
    %v1370 = vpack.c.bf16 %v1359, %v1356
    %1371 = vmatprep.subr.bf16.mxu0 0
    %1372 = vmatpush1.bf16.xpose.msra.mxu0 %v1363
    %1373 = vmatprep.subr.bf16.mxu0 0
    %1374 = vmatpush1.bf16.xpose.msra.mxu0 %v1364
    %1375 = vmatprep.subr.bf16.mxu0 0
    %1376 = vmatpush1.bf16.xpose.msra.mxu0 %v1365
    %1377 = vmatprep.subr.bf16.mxu0 0
    %1378 = vmatpush1.bf16.xpose.msra.mxu0 %v1366
    %1379 = vmatprep.subr.bf16.mxu0 0
    %1380 = vmatpush1.bf16.xpose.msra.mxu0 %v1367
    %1381 = vmatprep.subr.bf16.mxu0 0
    %1382 = vmatpush1.bf16.xpose.msra.mxu0 %v1368
    %1383 = vmatprep.subr.bf16.mxu0 0
    %1384 = vmatpush1.bf16.xpose.msra.mxu0 %v1369
    %1385 = vmatprep.subr.bf16.mxu0 0
    %1386 = vmatpush1.bf16.xpose.msra.mxu0 %v1370
    %1387 = vmatprep.subr.bf16.mxu0 0
    %1388 = vmatpush1.bf16.xpose.msra.mxu0 0
    %1389 = vmatprep.subr.bf16.mxu0 0
    %1390 = vmatpush1.bf16.xpose.msra.mxu0 0
    %1391 = vmatprep.subr.bf16.mxu0 0
    %1392 = vmatpush1.bf16.xpose.msra.mxu0 0
    %1393 = vmatprep.subr.bf16.mxu0 0
    %1394 = vmatpush1.bf16.xpose.msra.mxu0 0
    %1395 = vmatprep.subr.bf16.mxu0 0
    %1396 = vmatpush1.bf16.xpose.msra.mxu0 0
    %1397 = vmatprep.subr.bf16.mxu0 0
    %1398 = vmatpush1.bf16.xpose.msra.mxu0 0
    %1399 = vmatprep.subr.bf16.mxu0 0
    %1400 = vmatpush1.bf16.xpose.msra.mxu0 0
    %1401 = vmatprep.subr.bf16.mxu0 0
    %1402 = vmatpush1.bf16.xpose.msra.mxu0 0
    %1403 = vmatprep.mubr.bf16.mxu0 0
    %1404 = vmatmul.mubr.bf16.gmra.mrb[0].mxu0 %v1362
    %v1405 = vpop.f32.mrb[0].mxu0
    %v1406 = vadd.f32 0.0, %v1405
    %v1407 = vpop.f32.mrb[0].mxu0
    %v1408 = vpop.f32.mrb[0].mxu0
    %v1409 = vpop.f32.mrb[0].mxu0
    %1410 = vdwg.mxu0
    %1411 = vst [vmem:[#allocation2] sm:$0x3] %v1406
    // Predicated region
    $region26: #{mlgcn_forward.1} parent=1 // pred_check
      _
    $region27: #{mlgcn_forward.1} parent=1 // pred_check_branch
      %1413 = sbr.rel (0) target = $region29
    $region28: #{mlgcn_forward.1} parent=1 // pred_region
      %s1415 = ssub.s32 32, 32
      %1416 = vsyncadd [#allocation3], %s1415
      %s1418 = sshll.u32 [#allocation2], 4
      %s1419 = int_to_ptr.vmem [resolvable:$true] %s1418
      %1421 = dma.vmem_to_hbm [thread:$0]  %s1419, 32, %s6, [#allocation3]
    $region29: #{mlgcn_forward.1} parent=1 // pred_fallthru
      _
    // Predicated region
    $region30: #{mlgcn_forward.1} parent=1 // pred_check
      _
    $region31: #{mlgcn_forward.1} parent=1 // pred_check_branch
      %1423 = sbr.rel (0) target = $region33
    $region32: #{mlgcn_forward.1} parent=1 // pred_region
      %1424 = dma.done [#allocation3], 32
    $region33: #{mlgcn_forward.1} parent=1 // pred_fallthru
      _
    %1425 = vsyncpa [#allocation3], 1

</llo_original>
